<compile_context>
chip_gen: v7x
topology: tpu7x:2x2x1
jax: 0.10.0
libtpu: 0.0.40
codegen_flags: <defaults>
</compile_context>

<pallas_src>
import functools

import jax
import jax.numpy as jnp
from jax import lax
from jax.experimental import pallas as pl
from jax.experimental.pallas import tpu as pltpu

NUM_LAYER = 2
DIM = 32
DIM_NODE = 21
DIM_EDGE = 4                      # is_graph=False appends the sta_ap edge feats
BN_EPS = 1e-5                     # torch BatchNorm1d default
TM_MAX = 4096                     # row tile (amortizes ~0.35us/step overhead)
VMEM_LIMIT = 32 * 1024 * 1024     # explicit scoped-VMEM budget (v7x-safe)


def _round_up(x, m):
    return ((x + m - 1) // m) * m


# ---------------------------------------------------------------------------
# Fused 3-phase kernel.  grid = (3 phases, row tiles); row tiles are the fast
# (inner) axis, so all tiles of phase p run before phase p+1.
#   phase 0: accumulate per-feature sum / sumsq of the (node | edge) inputs
#   phase 1 (tile 0): fold BN0 -> per-feature affine (scale, shift) in scratch
#   phase 1: h1 = relu(BN0(x) @ W0 + b0); accumulate h1 sum / sumsq
#   phase 2 (tile 0): fold BN1 -> per-feature affine in scratch
#   phase 2: recompute h1, apply BN1, layer 1, predict, softplus -> out
# ---------------------------------------------------------------------------
def _fused_kernel(node_ref, edge_ref,
                  bn0n_g_ref, bn0n_b_ref, bn0e_g_ref, bn0e_b_ref,
                  w0n_ref, w0e_ref, lin0_b_ref,
                  bn1_g_ref, bn1_b_ref, w1_ref, lin1_b_ref,
                  wp_ref, pred_b_ref,
                  out_ref,
                  sum_n, sq_n, sum_e, sq_e, sum1, sq1,
                  s0n, t0n, s0e, t0e, s1, t1,
                  *, n_rows, tm, needs_mask):
    p = pl.program_id(0)          # phase
    i = pl.program_id(1)          # row tile
    inv_n = 1.0 / float(n_rows)   # static constant (n_rows is a Python int)

    xn = node_ref[...].astype(jnp.float32)   # (tm, 21)
    xe = edge_ref[...].astype(jnp.float32)   # (tm, 4)

    if needs_mask:  # only generated when N % tm != 0 (partial last tile)
        rows = i * tm + lax.broadcasted_iota(jnp.int32, (tm, 1), 0)
        valid = rows < n_rows

    # ---------------- phase 0: input feature statistics --------------------
    @pl.when(jnp.logical_and(p == 0, i == 0))
    def _init_stats0():
        sum_n[...] = jnp.zeros_like(sum_n)
        sq_n[...] = jnp.zeros_like(sq_n)
        sum_e[...] = jnp.zeros_like(sum_e)
        sq_e[...] = jnp.zeros_like(sq_e)

    @pl.when(p == 0)
    def _phase0():
        xnm = jnp.where(valid, xn, 0.0) if needs_mask else xn
        xem = jnp.where(valid, xe, 0.0) if needs_mask else xe
        sum_n[...] += jnp.sum(xnm, axis=0, keepdims=True)
        sq_n[...] += jnp.sum(xnm * xnm, axis=0, keepdims=True)
        sum_e[...] += jnp.sum(xem, axis=0, keepdims=True)
        sq_e[...] += jnp.sum(xem * xem, axis=0, keepdims=True)
        # Output block is revisited each phase; keep early writebacks
        # deterministic (final values are written in phase 2).
        out_ref[...] = jnp.zeros_like(out_ref)

    # --------- start of phase 1: fold BN0 into a per-feature affine --------
    @pl.when(jnp.logical_and(p == 1, i == 0))
    def _fold_bn0():
        mean_n = sum_n[...] * inv_n
        var_n = jnp.maximum(sq_n[...] * inv_n - mean_n * mean_n, 0.0)
        sc_n = bn0n_g_ref[...] * lax.rsqrt(var_n + BN_EPS)
        s0n[...] = sc_n
        t0n[...] = bn0n_b_ref[...] - mean_n * sc_n

        mean_e = sum_e[...] * inv_n
        var_e = jnp.maximum(sq_e[...] * inv_n - mean_e * mean_e, 0.0)
        sc_e = bn0e_g_ref[...] * lax.rsqrt(var_e + BN_EPS)
        s0e[...] = sc_e
        t0e[...] = bn0e_b_ref[...] - mean_e * sc_e

        sum1[...] = jnp.zeros_like(sum1)
        sq1[...] = jnp.zeros_like(sq1)

    def _layer0():
        # BN0 as per-feature affine on the activations, then Linear0 + ReLU.
        xnh = xn * s0n[...] + t0n[...]
        xeh = xe * s0e[...] + t0e[...]
        h = jnp.dot(xnh, w0n_ref[...], preferred_element_type=jnp.float32)
        h = h + jnp.dot(xeh, w0e_ref[...], preferred_element_type=jnp.float32)
        return jnp.maximum(h + lin0_b_ref[...], 0.0)          # (tm, 32)

    # ---------------- phase 1: layer-0 activation statistics ---------------
    @pl.when(p == 1)
    def _phase1():
        h1 = _layer0()
        if needs_mask:
            h1 = jnp.where(valid, h1, 0.0)
        sum1[...] += jnp.sum(h1, axis=0, keepdims=True)
        sq1[...] += jnp.sum(h1 * h1, axis=0, keepdims=True)

    # --------- start of phase 2: fold BN1 into a per-feature affine --------
    @pl.when(jnp.logical_and(p == 2, i == 0))
    def _fold_bn1():
        mean1 = sum1[...] * inv_n
        var1 = jnp.maximum(sq1[...] * inv_n - mean1 * mean1, 0.0)
        sc1 = bn1_g_ref[...] * lax.rsqrt(var1 + BN_EPS)
        s1[...] = sc1
        t1[...] = bn1_b_ref[...] - mean1 * sc1

    # --------- phase 2: recompute layer 0, BN1, layer 1, predict -----------
    @pl.when(p == 2)
    def _phase2():
        h1 = _layer0()
        h1n = h1 * s1[...] + t1[...]
        h2 = jnp.dot(h1n, w1_ref[...], preferred_element_type=jnp.float32)
        h2 = jnp.maximum(h2 + lin1_b_ref[...], 0.0)
        z = jnp.dot(h2, wp_ref[...], preferred_element_type=jnp.float32) + pred_b_ref[...]
        # softplus with torch defaults (beta=1, threshold=20)
        out_ref[...] = jnp.where(z > 20.0, z,
                                 jnp.log1p(jnp.exp(jnp.minimum(z, 20.0))))


@functools.partial(jax.jit, static_argnames=("tm_max",))
def netmodel_forward(node_feat, edge_feat, params, tm_max=TM_MAX):
    n = node_feat.shape[0]
    if n == 0:                                        # trace-time guard
        return jnp.zeros((0, 1), jnp.float32)

    tm = min(tm_max, _round_up(n, 8))
    num_tiles = pl.cdiv(n, tm)
    needs_mask = (n % tm) != 0

    # Split the concatenated-feature parameters once (tiny slices, outside kernel).
    bn0n_g = params["bn0_w"][:, :DIM_NODE]
    bn0n_b = params["bn0_b"][:, :DIM_NODE]
    bn0e_g = params["bn0_w"][:, DIM_NODE:]
    bn0e_b = params["bn0_b"][:, DIM_NODE:]
    w0n = params["w0"][:DIM_NODE, :]                  # (21, 32)
    w0e = params["w0"][DIM_NODE:, :]                  # (4, 32)

    row_node = pl.BlockSpec((tm, DIM_NODE), lambda p, i: (i, 0))
    row_edge = pl.BlockSpec((tm, DIM_EDGE), lambda p, i: (i, 0))

    def const_spec(shape):                            # resident params: fetched once
        return pl.BlockSpec(shape, lambda p, i: (0, 0))

    kernel = functools.partial(_fused_kernel, n_rows=n, tm=tm, needs_mask=needs_mask)

    f32 = jnp.float32
    out = pl.pallas_call(
        kernel,
        grid=(3, num_tiles),      # phase-major; row tiles are the fast axis
        in_specs=[row_node, row_edge,
                  const_spec((1, DIM_NODE)), const_spec((1, DIM_NODE)),
                  const_spec((1, DIM_EDGE)), const_spec((1, DIM_EDGE)),
                  const_spec((DIM_NODE, DIM)), const_spec((DIM_EDGE, DIM)),
                  const_spec((1, DIM)),
                  const_spec((1, DIM)), const_spec((1, DIM)),
                  const_spec((DIM, DIM)), const_spec((1, DIM)),
                  const_spec((DIM, 1)), const_spec((1, 1))],
        out_specs=pl.BlockSpec((tm, 1), lambda p, i: (i, 0)),
        out_shape=jax.ShapeDtypeStruct((n, 1), jnp.float32),
        scratch_shapes=[pltpu.VMEM((1, DIM_NODE), f32),  # sum_n
                        pltpu.VMEM((1, DIM_NODE), f32),  # sq_n
                        pltpu.VMEM((1, DIM_EDGE), f32),  # sum_e
                        pltpu.VMEM((1, DIM_EDGE), f32),  # sq_e
                        pltpu.VMEM((1, DIM), f32),       # sum1
                        pltpu.VMEM((1, DIM), f32),       # sq1
                        pltpu.VMEM((1, DIM_NODE), f32),  # s0n
                        pltpu.VMEM((1, DIM_NODE), f32),  # t0n
                        pltpu.VMEM((1, DIM_EDGE), f32),  # s0e
                        pltpu.VMEM((1, DIM_EDGE), f32),  # t0e
                        pltpu.VMEM((1, DIM), f32),       # s1
                        pltpu.VMEM((1, DIM), f32)],      # t1
        compiler_params=pltpu.CompilerParams(
            # Both axes "arbitrary": scratch accumulators / folded BN affines
            # carry state across grid steps.
            # TODO(synk): v7x 2-TC split of the accumulating phases (per-core
            # partial stat sums) not implemented; single-TC grid here.
            dimension_semantics=("arbitrary", "arbitrary"),
            vmem_limit_bytes=VMEM_LIMIT),
    )(node_feat, edge_feat,
      bn0n_g, bn0n_b, bn0e_g, bn0e_b,
      w0n, w0e, params["b0"],
      params["bn1_w"], params["bn1_b"], params["w1"], params["b1"],
      params["wp"], params["bp"])
    return out


# ---------------------------------------------------------------------------
# Parameter init (matches the PyTorch module defaults)
# ---------------------------------------------------------------------------
def xavier_uniform(key, fan_in, fan_out):
    limit = jnp.sqrt(6.0 / (fan_in + fan_out))
    return jax.random.uniform(key, (fan_in, fan_out), jnp.float32,
                              minval=-limit, maxval=limit)


def init_params(key):
    k0, k1, kp = jax.random.split(key, 3)
    din = DIM_NODE + DIM_EDGE
    return {
        "bn0_w": jnp.ones((1, din), jnp.float32),
        "bn0_b": jnp.zeros((1, din), jnp.float32),
        "bn1_w": jnp.ones((1, DIM), jnp.float32),
        "bn1_b": jnp.zeros((1, DIM), jnp.float32),
        "w0": xavier_uniform(k0, din, DIM),
        "b0": jnp.zeros((1, DIM), jnp.float32),
        "w1": xavier_uniform(k1, DIM, DIM),
        "b1": jnp.zeros((1, DIM), jnp.float32),
        "wp": xavier_uniform(kp, DIM, 1),
        "bp": jnp.zeros((1, 1), jnp.float32),
    }


def netmodel_reference(node_feat, edge_feat, params):
    """Pure-JAX f32 reference in PyTorch op order (un-folded BN)."""
    h = jnp.concatenate([node_feat, edge_feat], axis=1).astype(jnp.float32)
    hi = lax.Precision.HIGHEST

    def bn(x, g, b):
        mu = jnp.mean(x, axis=0, keepdims=True)
        var = jnp.mean((x - mu) ** 2, axis=0, keepdims=True)
        return (x - mu) * lax.rsqrt(var + BN_EPS) * g + b

    h = bn(h, params["bn0_w"], params["bn0_b"])
    h = jnp.maximum(jnp.dot(h, params["w0"], precision=hi) + params["b0"], 0.0)
    h = bn(h, params["bn1_w"], params["bn1_b"])
    h = jnp.maximum(jnp.dot(h, params["w1"], precision=hi) + params["b1"], 0.0)
    z = jnp.dot(h, params["wp"], precision=hi) + params["bp"]
    return jnp.where(z > 20.0, z, jnp.log1p(jnp.exp(jnp.minimum(z, 20.0))))


if __name__ == "__main__":
    key = jax.random.PRNGKey(0)
    k_param, k_n1, k_e1, k_n2, k_e2 = jax.random.split(key, 5)
    params = init_params(k_param)

    # Small shape consistent with the module (21 station-node feats, 4 sta_ap edge feats).
    n_small = 8
    node_s = jax.random.normal(k_n1, (n_small, DIM_NODE), jnp.float32)
    edge_s = jax.random.normal(k_e1, (n_small, DIM_EDGE), jnp.float32)
    out_s = jax.block_until_ready(netmodel_forward(node_s, edge_s, params))
    ref_s = netmodel_reference(node_s, edge_s, params)
    assert out_s.shape == (n_small, 1)
    assert bool(jnp.all(jnp.isfinite(out_s)))
    assert bool(jnp.all(out_s >= 0.0))               # softplus is non-negative
    assert bool(jnp.allclose(out_s, ref_s, rtol=3e-2, atol=3e-2))

    # Medium batch exercising the multi-tile grid, cross-tile stat accumulation
    # and the partial-last-tile masking path (tile size forced small).
    n_med = 600
    node_m = jax.random.normal(k_n2, (n_med, DIM_NODE), jnp.float32)
    edge_m = jax.random.normal(k_e2, (n_med, DIM_EDGE), jnp.float32)
    out_m = jax.block_until_ready(netmodel_forward(node_m, edge_m, params, tm_max=256))
    ref_m = netmodel_reference(node_m, edge_m, params)
    assert out_m.shape == (n_med, 1)
    assert bool(jnp.all(jnp.isfinite(out_m)))
    assert bool(jnp.allclose(out_m, ref_m, rtol=3e-2, atol=3e-2))

    print("KERNEL_OK")
</pallas_src>

<mosaic_0001>
module attributes {stable_mosaic.version = 11 : i64} {
  func.func @_fused_kernel(%arg0: i32, %arg1: i32, %arg2: memref<8x21xf32, #tpu.memory_space<vmem>>, %arg3: memref<8x4xf32, #tpu.memory_space<vmem>>, %arg4: memref<1x21xf32, #tpu.memory_space<vmem>>, %arg5: memref<1x21xf32, #tpu.memory_space<vmem>>, %arg6: memref<1x4xf32, #tpu.memory_space<vmem>>, %arg7: memref<1x4xf32, #tpu.memory_space<vmem>>, %arg8: memref<21x32xf32, #tpu.memory_space<vmem>>, %arg9: memref<4x32xf32, #tpu.memory_space<vmem>>, %arg10: memref<1x32xf32, #tpu.memory_space<vmem>>, %arg11: memref<1x32xf32, #tpu.memory_space<vmem>>, %arg12: memref<1x32xf32, #tpu.memory_space<vmem>>, %arg13: memref<32x32xf32, #tpu.memory_space<vmem>>, %arg14: memref<1x32xf32, #tpu.memory_space<vmem>>, %arg15: memref<32x1xf32, #tpu.memory_space<vmem>>, %arg16: memref<1x1xf32, #tpu.memory_space<vmem>>, %arg17: memref<8x1xf32, #tpu.memory_space<vmem>>, %arg18: memref<1x21xf32, #tpu.memory_space<vmem>>, %arg19: memref<1x21xf32, #tpu.memory_space<vmem>>, %arg20: memref<1x4xf32, #tpu.memory_space<vmem>>, %arg21: memref<1x4xf32, #tpu.memory_space<vmem>>, %arg22: memref<1x32xf32, #tpu.memory_space<vmem>>, %arg23: memref<1x32xf32, #tpu.memory_space<vmem>>, %arg24: memref<1x21xf32, #tpu.memory_space<vmem>>, %arg25: memref<1x21xf32, #tpu.memory_space<vmem>>, %arg26: memref<1x4xf32, #tpu.memory_space<vmem>>, %arg27: memref<1x4xf32, #tpu.memory_space<vmem>>, %arg28: memref<1x32xf32, #tpu.memory_space<vmem>>, %arg29: memref<1x32xf32, #tpu.memory_space<vmem>>) attributes {dimension_semantics = [#tpu.dimension_semantics<arbitrary>, #tpu.dimension_semantics<arbitrary>], iteration_bounds = array<i64: 3, 1>, scalar_prefetch = 0 : i64, scratch_operands = 12 : i64, tpu.core_type = #tpu.core_type<tc>, window_params = [{transform_indices = @transform_0, window_bounds = array<i64: 8, 21>}, {transform_indices = @transform_1, window_bounds = array<i64: 8, 4>}, {pipeline_mode = #tpu.pipeline_mode<synchronous>, transform_indices = @transform_2, window_bounds = array<i64: 1, 21>}, {pipeline_mode = #tpu.pipeline_mode<synchronous>, transform_indices = @transform_3, window_bounds = array<i64: 1, 21>}, {pipeline_mode = #tpu.pipeline_mode<synchronous>, transform_indices = @transform_4, window_bounds = array<i64: 1, 4>}, {pipeline_mode = #tpu.pipeline_mode<synchronous>, transform_indices = @transform_5, window_bounds = array<i64: 1, 4>}, {pipeline_mode = #tpu.pipeline_mode<synchronous>, transform_indices = @transform_6, window_bounds = array<i64: 21, 32>}, {pipeline_mode = #tpu.pipeline_mode<synchronous>, transform_indices = @transform_7, window_bounds = array<i64: 4, 32>}, {pipeline_mode = #tpu.pipeline_mode<synchronous>, transform_indices = @transform_8, window_bounds = array<i64: 1, 32>}, {pipeline_mode = #tpu.pipeline_mode<synchronous>, transform_indices = @transform_9, window_bounds = array<i64: 1, 32>}, {pipeline_mode = #tpu.pipeline_mode<synchronous>, transform_indices = @transform_10, window_bounds = array<i64: 1, 32>}, {pipeline_mode = #tpu.pipeline_mode<synchronous>, transform_indices = @transform_11, window_bounds = array<i64: 32, 32>}, {pipeline_mode = #tpu.pipeline_mode<synchronous>, transform_indices = @transform_12, window_bounds = array<i64: 1, 32>}, {pipeline_mode = #tpu.pipeline_mode<synchronous>, transform_indices = @transform_13, window_bounds = array<i64: 32, 1>}, {pipeline_mode = #tpu.pipeline_mode<synchronous>, transform_indices = @transform_14, window_bounds = array<i64: 1, 1>}, {transform_indices = @transform_15, window_bounds = array<i64: 8, 1>}]} {
    %c0 = arith.constant 0 : index
    %c0_0 = arith.constant 0 : index
    %0 = vector.load %arg2[%c0, %c0_0] : memref<8x21xf32, #tpu.memory_space<vmem>>, vector<8x21xf32>
    %c0_1 = arith.constant 0 : index
    %c0_2 = arith.constant 0 : index
    %1 = vector.load %arg3[%c0_1, %c0_2] : memref<8x4xf32, #tpu.memory_space<vmem>>, vector<8x4xf32>
    %c0_i32 = arith.constant 0 : i32
    %2 = arith.cmpi eq, %arg0, %c0_i32 : i32
    %c0_i32_3 = arith.constant 0 : i32
    %3 = arith.cmpi eq, %arg1, %c0_i32_3 : i32
    %4 = arith.andi %2, %3 : i1
    %5 = arith.extui %4 : i1 to i32
    %c0_i32_4 = arith.constant 0 : i32
    %6 = arith.cmpi ne, %5, %c0_i32_4 : i32
    scf.if %6 {
      %cst = arith.constant 0.000000e+00 : f32
      %26 = vector.broadcast %cst : f32 to vector<1x21xf32>
      %c0_15 = arith.constant 0 : index
      %c0_16 = arith.constant 0 : index
      %27 = vector.load %arg18[%c0_15, %c0_16] : memref<1x21xf32, #tpu.memory_space<vmem>>, vector<1x21xf32>
      tpu.vector_store %arg18[%c0_15, %c0_16], %26 {strides = array<i32>} : memref<1x21xf32, #tpu.memory_space<vmem>>, vector<1x21xf32>,
      %cst_17 = arith.constant 0.000000e+00 : f32
      %28 = vector.broadcast %cst_17 : f32 to vector<1x21xf32>
      %c0_18 = arith.constant 0 : index
      %c0_19 = arith.constant 0 : index
      %29 = vector.load %arg19[%c0_18, %c0_19] : memref<1x21xf32, #tpu.memory_space<vmem>>, vector<1x21xf32>
      tpu.vector_store %arg19[%c0_18, %c0_19], %28 {strides = array<i32>} : memref<1x21xf32, #tpu.memory_space<vmem>>, vector<1x21xf32>,
      %cst_20 = arith.constant 0.000000e+00 : f32
      %30 = vector.broadcast %cst_20 : f32 to vector<1x4xf32>
      %c0_21 = arith.constant 0 : index
      %c0_22 = arith.constant 0 : index
      %31 = vector.load %arg20[%c0_21, %c0_22] : memref<1x4xf32, #tpu.memory_space<vmem>>, vector<1x4xf32>
      tpu.vector_store %arg20[%c0_21, %c0_22], %30 {strides = array<i32>} : memref<1x4xf32, #tpu.memory_space<vmem>>, vector<1x4xf32>,
      %cst_23 = arith.constant 0.000000e+00 : f32
      %32 = vector.broadcast %cst_23 : f32 to vector<1x4xf32>
      %c0_24 = arith.constant 0 : index
      %c0_25 = arith.constant 0 : index
      %33 = vector.load %arg21[%c0_24, %c0_25] : memref<1x4xf32, #tpu.memory_space<vmem>>, vector<1x4xf32>
      tpu.vector_store %arg21[%c0_24, %c0_25], %32 {strides = array<i32>} : memref<1x4xf32, #tpu.memory_space<vmem>>, vector<1x4xf32>,
    } else {
    }
    %c0_i32_5 = arith.constant 0 : i32
    %7 = arith.cmpi eq, %arg0, %c0_i32_5 : i32
    %8 = arith.extui %7 : i1 to i32
    %c0_i32_6 = arith.constant 0 : i32
    %9 = arith.cmpi ne, %8, %c0_i32_6 : i32
    scf.if %9 {
      %c0_15 = arith.constant 0 : index
      %c0_16 = arith.constant 0 : index
      %26 = vector.load %arg18[%c0_15, %c0_16] : memref<1x21xf32, #tpu.memory_space<vmem>>, vector<1x21xf32>
      %cst = arith.constant dense<0.000000e+00> : vector<21xf32>
      %27 = vector.multi_reduction <add>, %0, %cst [0] : vector<8x21xf32> to vector<21xf32>
      %28 = vector.shape_cast %27 : vector<21xf32> to vector<1x21xf32>
      %29 = arith.addf %26, %28 : vector<1x21xf32>
      %c0_17 = arith.constant 0 : index
      %c0_18 = arith.constant 0 : index
      %30 = vector.load %arg18[%c0_17, %c0_18] : memref<1x21xf32, #tpu.memory_space<vmem>>, vector<1x21xf32>
      tpu.vector_store %arg18[%c0_17, %c0_18], %29 {strides = array<i32>} : memref<1x21xf32, #tpu.memory_space<vmem>>, vector<1x21xf32>,
      %c0_19 = arith.constant 0 : index
      %c0_20 = arith.constant 0 : index
      %31 = vector.load %arg19[%c0_19, %c0_20] : memref<1x21xf32, #tpu.memory_space<vmem>>, vector<1x21xf32>
      %32 = arith.mulf %0, %0 : vector<8x21xf32>
      %cst_21 = arith.constant dense<0.000000e+00> : vector<21xf32>
      %33 = vector.multi_reduction <add>, %32, %cst_21 [0] : vector<8x21xf32> to vector<21xf32>
      %34 = vector.shape_cast %33 : vector<21xf32> to vector<1x21xf32>
      %35 = arith.addf %31, %34 : vector<1x21xf32>
      %c0_22 = arith.constant 0 : index
      %c0_23 = arith.constant 0 : index
      %36 = vector.load %arg19[%c0_22, %c0_23] : memref<1x21xf32, #tpu.memory_space<vmem>>, vector<1x21xf32>
      tpu.vector_store %arg19[%c0_22, %c0_23], %35 {strides = array<i32>} : memref<1x21xf32, #tpu.memory_space<vmem>>, vector<1x21xf32>,
      %c0_24 = arith.constant 0 : index
      %c0_25 = arith.constant 0 : index
      %37 = vector.load %arg20[%c0_24, %c0_25] : memref<1x4xf32, #tpu.memory_space<vmem>>, vector<1x4xf32>
      %cst_26 = arith.constant dense<0.000000e+00> : vector<4xf32>
      %38 = vector.multi_reduction <add>, %1, %cst_26 [0] : vector<8x4xf32> to vector<4xf32>
      %39 = vector.shape_cast %38 : vector<4xf32> to vector<1x4xf32>
      %40 = arith.addf %37, %39 : vector<1x4xf32>
      %c0_27 = arith.constant 0 : index
      %c0_28 = arith.constant 0 : index
      %41 = vector.load %arg20[%c0_27, %c0_28] : memref<1x4xf32, #tpu.memory_space<vmem>>, vector<1x4xf32>
      tpu.vector_store %arg20[%c0_27, %c0_28], %40 {strides = array<i32>} : memref<1x4xf32, #tpu.memory_space<vmem>>, vector<1x4xf32>,
      %c0_29 = arith.constant 0 : index
      %c0_30 = arith.constant 0 : index
      %42 = vector.load %arg21[%c0_29, %c0_30] : memref<1x4xf32, #tpu.memory_space<vmem>>, vector<1x4xf32>
      %43 = arith.mulf %1, %1 : vector<8x4xf32>
      %cst_31 = arith.constant dense<0.000000e+00> : vector<4xf32>
      %44 = vector.multi_reduction <add>, %43, %cst_31 [0] : vector<8x4xf32> to vector<4xf32>
      %45 = vector.shape_cast %44 : vector<4xf32> to vector<1x4xf32>
      %46 = arith.addf %42, %45 : vector<1x4xf32>
      %c0_32 = arith.constant 0 : index
      %c0_33 = arith.constant 0 : index
      %47 = vector.load %arg21[%c0_32, %c0_33] : memref<1x4xf32, #tpu.memory_space<vmem>>, vector<1x4xf32>
      tpu.vector_store %arg21[%c0_32, %c0_33], %46 {strides = array<i32>} : memref<1x4xf32, #tpu.memory_space<vmem>>, vector<1x4xf32>,
      %cst_34 = arith.constant 0.000000e+00 : f32
      %48 = vector.broadcast %cst_34 : f32 to vector<8x1xf32>
      %c0_35 = arith.constant 0 : index
      %c0_36 = arith.constant 0 : index
      %49 = vector.load %arg17[%c0_35, %c0_36] : memref<8x1xf32, #tpu.memory_space<vmem>>, vector<8x1xf32>
      tpu.vector_store %arg17[%c0_35, %c0_36], %48 {strides = array<i32>} : memref<8x1xf32, #tpu.memory_space<vmem>>, vector<8x1xf32>,
    } else {
    }
    %c1_i32 = arith.constant 1 : i32
    %10 = arith.cmpi eq, %arg0, %c1_i32 : i32
    %c0_i32_7 = arith.constant 0 : i32
    %11 = arith.cmpi eq, %arg1, %c0_i32_7 : i32
    %12 = arith.andi %10, %11 : i1
    %13 = arith.extui %12 : i1 to i32
    %c0_i32_8 = arith.constant 0 : i32
    %14 = arith.cmpi ne, %13, %c0_i32_8 : i32
    scf.if %14 {
      %c0_15 = arith.constant 0 : index
      %c0_16 = arith.constant 0 : index
      %26 = vector.load %arg18[%c0_15, %c0_16] : memref<1x21xf32, #tpu.memory_space<vmem>>, vector<1x21xf32>
      %cst = arith.constant 1.250000e-01 : f32
      %27 = vector.broadcast %cst : f32 to vector<1x21xf32>
      %28 = arith.mulf %26, %27 : vector<1x21xf32>
      %c0_17 = arith.constant 0 : index
      %c0_18 = arith.constant 0 : index
      %29 = vector.load %arg19[%c0_17, %c0_18] : memref<1x21xf32, #tpu.memory_space<vmem>>, vector<1x21xf32>
      %cst_19 = arith.constant 1.250000e-01 : f32
      %30 = vector.broadcast %cst_19 : f32 to vector<1x21xf32>
      %31 = arith.mulf %29, %30 : vector<1x21xf32>
      %32 = arith.mulf %28, %28 : vector<1x21xf32>
      %33 = arith.subf %31, %32 : vector<1x21xf32>
      %cst_20 = arith.constant 0.000000e+00 : f32
      %34 = vector.broadcast %cst_20 : f32 to vector<1x21xf32>
      %35 = arith.maximumf %33, %34 : vector<1x21xf32>
      %c0_21 = arith.constant 0 : index
      %c0_22 = arith.constant 0 : index
      %36 = vector.load %arg4[%c0_21, %c0_22] : memref<1x21xf32, #tpu.memory_space<vmem>>, vector<1x21xf32>
      %cst_23 = arith.constant 9.99999974E-6 : f32
      %37 = vector.broadcast %cst_23 : f32 to vector<1x21xf32>
      %38 = arith.addf %35, %37 : vector<1x21xf32>
      %39 = math.rsqrt %38 : vector<1x21xf32>
      %40 = arith.mulf %36, %39 : vector<1x21xf32>
      %c0_24 = arith.constant 0 : index
      %c0_25 = arith.constant 0 : index
      %41 = vector.load %arg24[%c0_24, %c0_25] : memref<1x21xf32, #tpu.memory_space<vmem>>, vector<1x21xf32>
      tpu.vector_store %arg24[%c0_24, %c0_25], %40 {strides = array<i32>} : memref<1x21xf32, #tpu.memory_space<vmem>>, vector<1x21xf32>,
      %c0_26 = arith.constant 0 : index
      %c0_27 = arith.constant 0 : index
      %42 = vector.load %arg5[%c0_26, %c0_27] : memref<1x21xf32, #tpu.memory_space<vmem>>, vector<1x21xf32>
      %43 = arith.mulf %28, %40 : vector<1x21xf32>
      %44 = arith.subf %42, %43 : vector<1x21xf32>
      %c0_28 = arith.constant 0 : index
      %c0_29 = arith.constant 0 : index
      %45 = vector.load %arg25[%c0_28, %c0_29] : memref<1x21xf32, #tpu.memory_space<vmem>>, vector<1x21xf32>
      tpu.vector_store %arg25[%c0_28, %c0_29], %44 {strides = array<i32>} : memref<1x21xf32, #tpu.memory_space<vmem>>, vector<1x21xf32>,
      %c0_30 = arith.constant 0 : index
      %c0_31 = arith.constant 0 : index
      %46 = vector.load %arg20[%c0_30, %c0_31] : memref<1x4xf32, #tpu.memory_space<vmem>>, vector<1x4xf32>
      %cst_32 = arith.constant 1.250000e-01 : f32
      %47 = vector.broadcast %cst_32 : f32 to vector<1x4xf32>
      %48 = arith.mulf %46, %47 : vector<1x4xf32>
      %c0_33 = arith.constant 0 : index
      %c0_34 = arith.constant 0 : index
      %49 = vector.load %arg21[%c0_33, %c0_34] : memref<1x4xf32, #tpu.memory_space<vmem>>, vector<1x4xf32>
      %cst_35 = arith.constant 1.250000e-01 : f32
      %50 = vector.broadcast %cst_35 : f32 to vector<1x4xf32>
      %51 = arith.mulf %49, %50 : vector<1x4xf32>
      %52 = arith.mulf %48, %48 : vector<1x4xf32>
      %53 = arith.subf %51, %52 : vector<1x4xf32>
      %cst_36 = arith.constant 0.000000e+00 : f32
      %54 = vector.broadcast %cst_36 : f32 to vector<1x4xf32>
      %55 = arith.maximumf %53, %54 : vector<1x4xf32>
      %c0_37 = arith.constant 0 : index
      %c0_38 = arith.constant 0 : index
      %56 = vector.load %arg6[%c0_37, %c0_38] : memref<1x4xf32, #tpu.memory_space<vmem>>, vector<1x4xf32>
      %cst_39 = arith.constant 9.99999974E-6 : f32
      %57 = vector.broadcast %cst_39 : f32 to vector<1x4xf32>
      %58 = arith.addf %55, %57 : vector<1x4xf32>
      %59 = math.rsqrt %58 : vector<1x4xf32>
      %60 = arith.mulf %56, %59 : vector<1x4xf32>
      %c0_40 = arith.constant 0 : index
      %c0_41 = arith.constant 0 : index
      %61 = vector.load %arg26[%c0_40, %c0_41] : memref<1x4xf32, #tpu.memory_space<vmem>>, vector<1x4xf32>
      tpu.vector_store %arg26[%c0_40, %c0_41], %60 {strides = array<i32>} : memref<1x4xf32, #tpu.memory_space<vmem>>, vector<1x4xf32>,
      %c0_42 = arith.constant 0 : index
      %c0_43 = arith.constant 0 : index
      %62 = vector.load %arg7[%c0_42, %c0_43] : memref<1x4xf32, #tpu.memory_space<vmem>>, vector<1x4xf32>
      %63 = arith.mulf %48, %60 : vector<1x4xf32>
      %64 = arith.subf %62, %63 : vector<1x4xf32>
      %c0_44 = arith.constant 0 : index
      %c0_45 = arith.constant 0 : index
      %65 = vector.load %arg27[%c0_44, %c0_45] : memref<1x4xf32, #tpu.memory_space<vmem>>, vector<1x4xf32>
      tpu.vector_store %arg27[%c0_44, %c0_45], %64 {strides = array<i32>} : memref<1x4xf32, #tpu.memory_space<vmem>>, vector<1x4xf32>,
      %cst_46 = arith.constant 0.000000e+00 : f32
      %66 = vector.broadcast %cst_46 : f32 to vector<1x32xf32>
      %c0_47 = arith.constant 0 : index
      %c0_48 = arith.constant 0 : index
      %67 = vector.load %arg22[%c0_47, %c0_48] : memref<1x32xf32, #tpu.memory_space<vmem>>, vector<1x32xf32>
      tpu.vector_store %arg22[%c0_47, %c0_48], %66 {strides = array<i32>} : memref<1x32xf32, #tpu.memory_space<vmem>>, vector<1x32xf32>,
      %cst_49 = arith.constant 0.000000e+00 : f32
      %68 = vector.broadcast %cst_49 : f32 to vector<1x32xf32>
      %c0_50 = arith.constant 0 : index
      %c0_51 = arith.constant 0 : index
      %69 = vector.load %arg23[%c0_50, %c0_51] : memref<1x32xf32, #tpu.memory_space<vmem>>, vector<1x32xf32>
      tpu.vector_store %arg23[%c0_50, %c0_51], %68 {strides = array<i32>} : memref<1x32xf32, #tpu.memory_space<vmem>>, vector<1x32xf32>,
    } else {
    }
    %c1_i32_9 = arith.constant 1 : i32
    %15 = arith.cmpi eq, %arg0, %c1_i32_9 : i32
    %16 = arith.extui %15 : i1 to i32
    %c0_i32_10 = arith.constant 0 : i32
    %17 = arith.cmpi ne, %16, %c0_i32_10 : i32
    scf.if %17 {
      %c0_15 = arith.constant 0 : index
      %c0_16 = arith.constant 0 : index
      %26 = vector.load %arg24[%c0_15, %c0_16] : memref<1x21xf32, #tpu.memory_space<vmem>>, vector<1x21xf32>
      %27 = vector.broadcast %26 : vector<1x21xf32> to vector<8x21xf32>
      %28 = arith.mulf %0, %27 : vector<8x21xf32>
      %c0_17 = arith.constant 0 : index
      %c0_18 = arith.constant 0 : index
      %29 = vector.load %arg25[%c0_17, %c0_18] : memref<1x21xf32, #tpu.memory_space<vmem>>, vector<1x21xf32>
      %30 = vector.broadcast %29 : vector<1x21xf32> to vector<8x21xf32>
      %31 = arith.addf %28, %30 : vector<8x21xf32>
      %c0_19 = arith.constant 0 : index
      %c0_20 = arith.constant 0 : index
      %32 = vector.load %arg26[%c0_19, %c0_20] : memref<1x4xf32, #tpu.memory_space<vmem>>, vector<1x4xf32>
      %33 = vector.broadcast %32 : vector<1x4xf32> to vector<8x4xf32>
      %34 = arith.mulf %1, %33 : vector<8x4xf32>
      %c0_21 = arith.constant 0 : index
      %c0_22 = arith.constant 0 : index
      %35 = vector.load %arg27[%c0_21, %c0_22] : memref<1x4xf32, #tpu.memory_space<vmem>>, vector<1x4xf32>
      %36 = vector.broadcast %35 : vector<1x4xf32> to vector<8x4xf32>
      %37 = arith.addf %34, %36 : vector<8x4xf32>
      %c0_23 = arith.constant 0 : index
      %c0_24 = arith.constant 0 : index
      %38 = vector.load %arg8[%c0_23, %c0_24] : memref<21x32xf32, #tpu.memory_space<vmem>>, vector<21x32xf32>
      %cst = arith.constant dense<0.000000e+00> : vector<8x32xf32>
      %39 = tpu.matmul %31, %38, %cst {dimension_numbers = #tpu.dot_dimension_numbers<[1], [0], [0], [1], [0, 0, 1, 1], [], []>} : vector<8x21xf32>, vector<21x32xf32>, vector<8x32xf32> -> vector<8x32xf32>
      %c0_25 = arith.constant 0 : index
      %c0_26 = arith.constant 0 : index
      %40 = vector.load %arg9[%c0_25, %c0_26] : memref<4x32xf32, #tpu.memory_space<vmem>>, vector<4x32xf32>
      %cst_27 = arith.constant dense<0.000000e+00> : vector<8x32xf32>
      %41 = tpu.matmul %37, %40, %cst_27 {dimension_numbers = #tpu.dot_dimension_numbers<[1], [0], [0], [1], [0, 0, 1, 1], [], []>} : vector<8x4xf32>, vector<4x32xf32>, vector<8x32xf32> -> vector<8x32xf32>
      %42 = arith.addf %39, %41 : vector<8x32xf32>
      %c0_28 = arith.constant 0 : index
      %c0_29 = arith.constant 0 : index
      %43 = vector.load %arg10[%c0_28, %c0_29] : memref<1x32xf32, #tpu.memory_space<vmem>>, vector<1x32xf32>
      %44 = vector.broadcast %43 : vector<1x32xf32> to vector<8x32xf32>
      %45 = arith.addf %42, %44 : vector<8x32xf32>
      %cst_30 = arith.constant 0.000000e+00 : f32
      %46 = vector.broadcast %cst_30 : f32 to vector<8x32xf32>
      %47 = arith.maximumf %45, %46 : vector<8x32xf32>
      %c0_31 = arith.constant 0 : index
      %c0_32 = arith.constant 0 : index
      %48 = vector.load %arg22[%c0_31, %c0_32] : memref<1x32xf32, #tpu.memory_space<vmem>>, vector<1x32xf32>
      %cst_33 = arith.constant dense<0.000000e+00> : vector<32xf32>
      %49 = vector.multi_reduction <add>, %47, %cst_33 [0] : vector<8x32xf32> to vector<32xf32>
      %50 = vector.shape_cast %49 : vector<32xf32> to vector<1x32xf32>
      %51 = arith.addf %48, %50 : vector<1x32xf32>
      %c0_34 = arith.constant 0 : index
      %c0_35 = arith.constant 0 : index
      %52 = vector.load %arg22[%c0_34, %c0_35] : memref<1x32xf32, #tpu.memory_space<vmem>>, vector<1x32xf32>
      tpu.vector_store %arg22[%c0_34, %c0_35], %51 {strides = array<i32>} : memref<1x32xf32, #tpu.memory_space<vmem>>, vector<1x32xf32>,
      %c0_36 = arith.constant 0 : index
      %c0_37 = arith.constant 0 : index
      %53 = vector.load %arg23[%c0_36, %c0_37] : memref<1x32xf32, #tpu.memory_space<vmem>>, vector<1x32xf32>
      %54 = arith.mulf %47, %47 : vector<8x32xf32>
      %cst_38 = arith.constant dense<0.000000e+00> : vector<32xf32>
      %55 = vector.multi_reduction <add>, %54, %cst_38 [0] : vector<8x32xf32> to vector<32xf32>
      %56 = vector.shape_cast %55 : vector<32xf32> to vector<1x32xf32>
      %57 = arith.addf %53, %56 : vector<1x32xf32>
      %c0_39 = arith.constant 0 : index
      %c0_40 = arith.constant 0 : index
      %58 = vector.load %arg23[%c0_39, %c0_40] : memref<1x32xf32, #tpu.memory_space<vmem>>, vector<1x32xf32>
      tpu.vector_store %arg23[%c0_39, %c0_40], %57 {strides = array<i32>} : memref<1x32xf32, #tpu.memory_space<vmem>>, vector<1x32xf32>,
    } else {
    }
    %c2_i32 = arith.constant 2 : i32
    %18 = arith.cmpi eq, %arg0, %c2_i32 : i32
    %c0_i32_11 = arith.constant 0 : i32
    %19 = arith.cmpi eq, %arg1, %c0_i32_11 : i32
    %20 = arith.andi %18, %19 : i1
    %21 = arith.extui %20 : i1 to i32
    %c0_i32_12 = arith.constant 0 : i32
    %22 = arith.cmpi ne, %21, %c0_i32_12 : i32
    scf.if %22 {
      %c0_15 = arith.constant 0 : index
      %c0_16 = arith.constant 0 : index
      %26 = vector.load %arg22[%c0_15, %c0_16] : memref<1x32xf32, #tpu.memory_space<vmem>>, vector<1x32xf32>
      %cst = arith.constant 1.250000e-01 : f32
      %27 = vector.broadcast %cst : f32 to vector<1x32xf32>
      %28 = arith.mulf %26, %27 : vector<1x32xf32>
      %c0_17 = arith.constant 0 : index
      %c0_18 = arith.constant 0 : index
      %29 = vector.load %arg23[%c0_17, %c0_18] : memref<1x32xf32, #tpu.memory_space<vmem>>, vector<1x32xf32>
      %cst_19 = arith.constant 1.250000e-01 : f32
      %30 = vector.broadcast %cst_19 : f32 to vector<1x32xf32>
      %31 = arith.mulf %29, %30 : vector<1x32xf32>
      %32 = arith.mulf %28, %28 : vector<1x32xf32>
      %33 = arith.subf %31, %32 : vector<1x32xf32>
      %cst_20 = arith.constant 0.000000e+00 : f32
      %34 = vector.broadcast %cst_20 : f32 to vector<1x32xf32>
      %35 = arith.maximumf %33, %34 : vector<1x32xf32>
      %c0_21 = arith.constant 0 : index
      %c0_22 = arith.constant 0 : index
      %36 = vector.load %arg11[%c0_21, %c0_22] : memref<1x32xf32, #tpu.memory_space<vmem>>, vector<1x32xf32>
      %cst_23 = arith.constant 9.99999974E-6 : f32
      %37 = vector.broadcast %cst_23 : f32 to vector<1x32xf32>
      %38 = arith.addf %35, %37 : vector<1x32xf32>
      %39 = math.rsqrt %38 : vector<1x32xf32>
      %40 = arith.mulf %36, %39 : vector<1x32xf32>
      %c0_24 = arith.constant 0 : index
      %c0_25 = arith.constant 0 : index
      %41 = vector.load %arg28[%c0_24, %c0_25] : memref<1x32xf32, #tpu.memory_space<vmem>>, vector<1x32xf32>
      tpu.vector_store %arg28[%c0_24, %c0_25], %40 {strides = array<i32>} : memref<1x32xf32, #tpu.memory_space<vmem>>, vector<1x32xf32>,
      %c0_26 = arith.constant 0 : index
      %c0_27 = arith.constant 0 : index
      %42 = vector.load %arg12[%c0_26, %c0_27] : memref<1x32xf32, #tpu.memory_space<vmem>>, vector<1x32xf32>
      %43 = arith.mulf %28, %40 : vector<1x32xf32>
      %44 = arith.subf %42, %43 : vector<1x32xf32>
      %c0_28 = arith.constant 0 : index
      %c0_29 = arith.constant 0 : index
      %45 = vector.load %arg29[%c0_28, %c0_29] : memref<1x32xf32, #tpu.memory_space<vmem>>, vector<1x32xf32>
      tpu.vector_store %arg29[%c0_28, %c0_29], %44 {strides = array<i32>} : memref<1x32xf32, #tpu.memory_space<vmem>>, vector<1x32xf32>,
    } else {
    }
    %c2_i32_13 = arith.constant 2 : i32
    %23 = arith.cmpi eq, %arg0, %c2_i32_13 : i32
    %24 = arith.extui %23 : i1 to i32
    %c0_i32_14 = arith.constant 0 : i32
    %25 = arith.cmpi ne, %24, %c0_i32_14 : i32
    scf.if %25 {
      %c0_15 = arith.constant 0 : index
      %c0_16 = arith.constant 0 : index
      %26 = vector.load %arg24[%c0_15, %c0_16] : memref<1x21xf32, #tpu.memory_space<vmem>>, vector<1x21xf32>
      %27 = vector.broadcast %26 : vector<1x21xf32> to vector<8x21xf32>
      %28 = arith.mulf %0, %27 : vector<8x21xf32>
      %c0_17 = arith.constant 0 : index
      %c0_18 = arith.constant 0 : index
      %29 = vector.load %arg25[%c0_17, %c0_18] : memref<1x21xf32, #tpu.memory_space<vmem>>, vector<1x21xf32>
      %30 = vector.broadcast %29 : vector<1x21xf32> to vector<8x21xf32>
      %31 = arith.addf %28, %30 : vector<8x21xf32>
      %c0_19 = arith.constant 0 : index
      %c0_20 = arith.constant 0 : index
      %32 = vector.load %arg26[%c0_19, %c0_20] : memref<1x4xf32, #tpu.memory_space<vmem>>, vector<1x4xf32>
      %33 = vector.broadcast %32 : vector<1x4xf32> to vector<8x4xf32>
      %34 = arith.mulf %1, %33 : vector<8x4xf32>
      %c0_21 = arith.constant 0 : index
      %c0_22 = arith.constant 0 : index
      %35 = vector.load %arg27[%c0_21, %c0_22] : memref<1x4xf32, #tpu.memory_space<vmem>>, vector<1x4xf32>
      %36 = vector.broadcast %35 : vector<1x4xf32> to vector<8x4xf32>
      %37 = arith.addf %34, %36 : vector<8x4xf32>
      %c0_23 = arith.constant 0 : index
      %c0_24 = arith.constant 0 : index
      %38 = vector.load %arg8[%c0_23, %c0_24] : memref<21x32xf32, #tpu.memory_space<vmem>>, vector<21x32xf32>
      %cst = arith.constant dense<0.000000e+00> : vector<8x32xf32>
      %39 = tpu.matmul %31, %38, %cst {dimension_numbers = #tpu.dot_dimension_numbers<[1], [0], [0], [1], [0, 0, 1, 1], [], []>} : vector<8x21xf32>, vector<21x32xf32>, vector<8x32xf32> -> vector<8x32xf32>
      %c0_25 = arith.constant 0 : index
      %c0_26 = arith.constant 0 : index
      %40 = vector.load %arg9[%c0_25, %c0_26] : memref<4x32xf32, #tpu.memory_space<vmem>>, vector<4x32xf32>
      %cst_27 = arith.constant dense<0.000000e+00> : vector<8x32xf32>
      %41 = tpu.matmul %37, %40, %cst_27 {dimension_numbers = #tpu.dot_dimension_numbers<[1], [0], [0], [1], [0, 0, 1, 1], [], []>} : vector<8x4xf32>, vector<4x32xf32>, vector<8x32xf32> -> vector<8x32xf32>
      %42 = arith.addf %39, %41 : vector<8x32xf32>
      %c0_28 = arith.constant 0 : index
      %c0_29 = arith.constant 0 : index
      %43 = vector.load %arg10[%c0_28, %c0_29] : memref<1x32xf32, #tpu.memory_space<vmem>>, vector<1x32xf32>
      %44 = vector.broadcast %43 : vector<1x32xf32> to vector<8x32xf32>
      %45 = arith.addf %42, %44 : vector<8x32xf32>
      %cst_30 = arith.constant 0.000000e+00 : f32
      %46 = vector.broadcast %cst_30 : f32 to vector<8x32xf32>
      %47 = arith.maximumf %45, %46 : vector<8x32xf32>
      %c0_31 = arith.constant 0 : index
      %c0_32 = arith.constant 0 : index
      %48 = vector.load %arg28[%c0_31, %c0_32] : memref<1x32xf32, #tpu.memory_space<vmem>>, vector<1x32xf32>
      %49 = vector.broadcast %48 : vector<1x32xf32> to vector<8x32xf32>
      %50 = arith.mulf %47, %49 : vector<8x32xf32>
      %c0_33 = arith.constant 0 : index
      %c0_34 = arith.constant 0 : index
      %51 = vector.load %arg29[%c0_33, %c0_34] : memref<1x32xf32, #tpu.memory_space<vmem>>, vector<1x32xf32>
      %52 = vector.broadcast %51 : vector<1x32xf32> to vector<8x32xf32>
      %53 = arith.addf %50, %52 : vector<8x32xf32>
      %c0_35 = arith.constant 0 : index
      %c0_36 = arith.constant 0 : index
      %54 = vector.load %arg13[%c0_35, %c0_36] : memref<32x32xf32, #tpu.memory_space<vmem>>, vector<32x32xf32>
      %cst_37 = arith.constant dense<0.000000e+00> : vector<8x32xf32>
      %55 = tpu.matmul %53, %54, %cst_37 {dimension_numbers = #tpu.dot_dimension_numbers<[1], [0], [0], [1], [0, 0, 1, 1], [], []>} : vector<8x32xf32>, vector<32x32xf32>, vector<8x32xf32> -> vector<8x32xf32>
      %c0_38 = arith.constant 0 : index
      %c0_39 = arith.constant 0 : index
      %56 = vector.load %arg14[%c0_38, %c0_39] : memref<1x32xf32, #tpu.memory_space<vmem>>, vector<1x32xf32>
      %57 = vector.broadcast %56 : vector<1x32xf32> to vector<8x32xf32>
      %58 = arith.addf %55, %57 : vector<8x32xf32>
      %cst_40 = arith.constant 0.000000e+00 : f32
      %59 = vector.broadcast %cst_40 : f32 to vector<8x32xf32>
      %60 = arith.maximumf %58, %59 : vector<8x32xf32>
      %c0_41 = arith.constant 0 : index
      %c0_42 = arith.constant 0 : index
      %61 = vector.load %arg15[%c0_41, %c0_42] : memref<32x1xf32, #tpu.memory_space<vmem>>, vector<32x1xf32>
      %cst_43 = arith.constant dense<0.000000e+00> : vector<8x1xf32>
      %62 = tpu.matmul %60, %61, %cst_43 {dimension_numbers = #tpu.dot_dimension_numbers<[1], [0], [0], [1], [0, 0, 1, 1], [], []>} : vector<8x32xf32>, vector<32x1xf32>, vector<8x1xf32> -> vector<8x1xf32>
      %c0_44 = arith.constant 0 : index
      %c0_45 = arith.constant 0 : index
      %63 = vector.load %arg16[%c0_44, %c0_45] : memref<1x1xf32, #tpu.memory_space<vmem>>, vector<1x1xf32>
      %64 = vector.broadcast %63 : vector<1x1xf32> to vector<8x1xf32>
      %65 = arith.addf %62, %64 : vector<8x1xf32>
      %cst_46 = arith.constant 2.000000e+01 : f32
      %66 = vector.broadcast %cst_46 : f32 to vector<8x1xf32>
      %67 = arith.cmpf ogt, %65, %66 : vector<8x1xf32>
      %cst_47 = arith.constant 2.000000e+01 : f32
      %68 = vector.broadcast %cst_47 : f32 to vector<8x1xf32>
      %69 = arith.minimumf %65, %68 : vector<8x1xf32>
      %70 = math.exp %69 : vector<8x1xf32>
      %71 = math.log1p %70 : vector<8x1xf32>
      %72 = arith.select %67, %65, %71 : vector<8x1xi1>, vector<8x1xf32>
      %c0_48 = arith.constant 0 : index
      %c0_49 = arith.constant 0 : index
      %73 = vector.load %arg17[%c0_48, %c0_49] : memref<8x1xf32, #tpu.memory_space<vmem>>, vector<8x1xf32>
      tpu.vector_store %arg17[%c0_48, %c0_49], %72 {strides = array<i32>} : memref<8x1xf32, #tpu.memory_space<vmem>>, vector<8x1xf32>,
    } else {
    }
    return
  }
  func.func @transform_0(%arg0: i32, %arg1: i32) -> (i32, i32) {
    %c0_i32 = arith.constant 0 : i32
    %c0_i32_0 = arith.constant 0 : i32
    return %arg1, %c0_i32 : i32, i32
  }
  func.func @transform_1(%arg0: i32, %arg1: i32) -> (i32, i32) {
    %c0_i32 = arith.constant 0 : i32
    %c0_i32_0 = arith.constant 0 : i32
    return %arg1, %c0_i32 : i32, i32
  }
  func.func @transform_2(%arg0: i32, %arg1: i32) -> (i32, i32) {
    %c0_i32 = arith.constant 0 : i32
    %c0_i32_0 = arith.constant 0 : i32
    %c0_i32_1 = arith.constant 0 : i32
    return %c0_i32, %c0_i32_0 : i32, i32
  }
  func.func @transform_3(%arg0: i32, %arg1: i32) -> (i32, i32) {
    %c0_i32 = arith.constant 0 : i32
    %c0_i32_0 = arith.constant 0 : i32
    %c0_i32_1 = arith.constant 0 : i32
    return %c0_i32, %c0_i32_0 : i32, i32
  }
  func.func @transform_4(%arg0: i32, %arg1: i32) -> (i32, i32) {
    %c0_i32 = arith.constant 0 : i32
    %c0_i32_0 = arith.constant 0 : i32
    %c0_i32_1 = arith.constant 0 : i32
    return %c0_i32, %c0_i32_0 : i32, i32
  }
  func.func @transform_5(%arg0: i32, %arg1: i32) -> (i32, i32) {
    %c0_i32 = arith.constant 0 : i32
    %c0_i32_0 = arith.constant 0 : i32
    %c0_i32_1 = arith.constant 0 : i32
    return %c0_i32, %c0_i32_0 : i32, i32
  }
  func.func @transform_6(%arg0: i32, %arg1: i32) -> (i32, i32) {
    %c0_i32 = arith.constant 0 : i32
    %c0_i32_0 = arith.constant 0 : i32
    %c0_i32_1 = arith.constant 0 : i32
    return %c0_i32, %c0_i32_0 : i32, i32
  }
  func.func @transform_7(%arg0: i32, %arg1: i32) -> (i32, i32) {
    %c0_i32 = arith.constant 0 : i32
    %c0_i32_0 = arith.constant 0 : i32
    %c0_i32_1 = arith.constant 0 : i32
    return %c0_i32, %c0_i32_0 : i32, i32
  }
  func.func @transform_8(%arg0: i32, %arg1: i32) -> (i32, i32) {
    %c0_i32 = arith.constant 0 : i32
    %c0_i32_0 = arith.constant 0 : i32
    %c0_i32_1 = arith.constant 0 : i32
    return %c0_i32, %c0_i32_0 : i32, i32
  }
  func.func @transform_9(%arg0: i32, %arg1: i32) -> (i32, i32) {
    %c0_i32 = arith.constant 0 : i32
    %c0_i32_0 = arith.constant 0 : i32
    %c0_i32_1 = arith.constant 0 : i32
    return %c0_i32, %c0_i32_0 : i32, i32
  }
  func.func @transform_10(%arg0: i32, %arg1: i32) -> (i32, i32) {
    %c0_i32 = arith.constant 0 : i32
    %c0_i32_0 = arith.constant 0 : i32
    %c0_i32_1 = arith.constant 0 : i32
    return %c0_i32, %c0_i32_0 : i32, i32
  }
  func.func @transform_11(%arg0: i32, %arg1: i32) -> (i32, i32) {
    %c0_i32 = arith.constant 0 : i32
    %c0_i32_0 = arith.constant 0 : i32
    %c0_i32_1 = arith.constant 0 : i32
    return %c0_i32, %c0_i32_0 : i32, i32
  }
  func.func @transform_12(%arg0: i32, %arg1: i32) -> (i32, i32) {
    %c0_i32 = arith.constant 0 : i32
    %c0_i32_0 = arith.constant 0 : i32
    %c0_i32_1 = arith.constant 0 : i32
    return %c0_i32, %c0_i32_0 : i32, i32
  }
  func.func @transform_13(%arg0: i32, %arg1: i32) -> (i32, i32) {
    %c0_i32 = arith.constant 0 : i32
    %c0_i32_0 = arith.constant 0 : i32
    %c0_i32_1 = arith.constant 0 : i32
    return %c0_i32, %c0_i32_0 : i32, i32
  }
  func.func @transform_14(%arg0: i32, %arg1: i32) -> (i32, i32) {
    %c0_i32 = arith.constant 0 : i32
    %c0_i32_0 = arith.constant 0 : i32
    %c0_i32_1 = arith.constant 0 : i32
    return %c0_i32, %c0_i32_0 : i32, i32
  }
  func.func @transform_15(%arg0: i32, %arg1: i32) -> (i32, i32) {
    %c0_i32 = arith.constant 0 : i32
    %c0_i32_0 = arith.constant 0 : i32
    return %arg1, %c0_i32 : i32, i32
  }
}

</mosaic_0001>

<llo_original>
// kernel: netmodel_forward.1
$region0: #{netmodel_forward.1}
  #allocation0 [shape = 'u32[]', space=smem, size = 0x4, offset = 0x4, fixed_abs, tag = 'smem constant byte address 0x4 - core index']
  #allocation1 [shape = 'u32[144,128]{1,0:T(1,128)}', space=vmem, size = 0x12000, scoped, tag = 'internal scratch']
  #allocation2 [shape = 'f32[1,21]{1,0:T(1,128)}', space=vmem, size = 0x200, scoped, tag = 'scratch operand']
  #allocation3 [shape = 'f32[1,21]{1,0:T(1,128)}', space=vmem, size = 0x200, scoped, tag = 'scratch operand']
  #allocation4 [shape = 'f32[1,4]{1,0:T(1,128)}', space=vmem, size = 0x200, scoped, tag = 'scratch operand']
  #allocation5 [shape = 'f32[1,4]{1,0:T(1,128)}', space=vmem, size = 0x200, scoped, tag = 'scratch operand']
  #allocation6 [shape = 'f32[1,32]{1,0:T(1,128)}', space=vmem, size = 0x200, scoped, tag = 'scratch operand']
  #allocation7 [shape = 'f32[1,32]{1,0:T(1,128)}', space=vmem, size = 0x200, scoped, tag = 'scratch operand']
  #allocation8 [shape = 'f32[1,21]{1,0:T(1,128)}', space=vmem, size = 0x200, scoped, tag = 'scratch operand']
  #allocation9 [shape = 'f32[1,21]{1,0:T(1,128)}', space=vmem, size = 0x200, scoped, tag = 'scratch operand']
  #allocation10 [shape = 'f32[1,4]{1,0:T(1,128)}', space=vmem, size = 0x200, scoped, tag = 'scratch operand']
  #allocation11 [shape = 'f32[1,4]{1,0:T(1,128)}', space=vmem, size = 0x200, scoped, tag = 'scratch operand']
  #allocation12 [shape = 'f32[1,32]{1,0:T(1,128)}', space=vmem, size = 0x200, scoped, tag = 'scratch operand']
  #allocation13 [shape = 'f32[1,32]{1,0:T(1,128)}', space=vmem, size = 0x200, scoped, tag = 'scratch operand']
  #allocation14 [shape = 'f32[1,1]{1,0:T(1,128)S(1)}', space=vmem, size = 0x200, scoped, tag = 'scoped memory for netmodel_forward.1']
  %s0 = inlined_call_operand.vmem [shape: f32[8,21], index: 0, kind: input, shape index: {}]
  %s1 = inlined_call_operand.vmem [shape: f32[8,4], index: 1, kind: input, shape index: {}]
  %s2 = inlined_call_operand.vmem [shape: f32[1,21], index: 2, kind: input, shape index: {}]
  %s3 = inlined_call_operand.vmem [shape: f32[1,21], index: 3, kind: input, shape index: {}]
  %s4 = inlined_call_operand.vmem [shape: f32[1,4], index: 4, kind: input, shape index: {}]
  %s5 = inlined_call_operand.vmem [shape: f32[1,4], index: 5, kind: input, shape index: {}]
  %s6 = inlined_call_operand.vmem [shape: f32[21,32], index: 6, kind: input, shape index: {}]
  %s7 = inlined_call_operand.vmem [shape: f32[4,32], index: 7, kind: input, shape index: {}]
  %s8 = inlined_call_operand.vmem [shape: f32[1,32], index: 8, kind: input, shape index: {}]
  %s9 = inlined_call_operand.vmem [shape: f32[1,32], index: 9, kind: input, shape index: {}]
  %s10 = inlined_call_operand.vmem [shape: f32[1,32], index: 10, kind: input, shape index: {}]
  %s11 = inlined_call_operand.vmem [shape: f32[32,32], index: 11, kind: input, shape index: {}]
  %s12 = inlined_call_operand.vmem [shape: f32[1,32], index: 12, kind: input, shape index: {}]
  %s13 = inlined_call_operand.vmem [shape: f32[32,1], index: 13, kind: input, shape index: {}]
  %s14 = inlined_call_operand.<no memory space> [shape: f32[1,1], index: 14, kind: input, shape index: {}]
  %s15 = inlined_call_operand.vmem [shape: f32[8,1], index: 15, kind: output, shape index: {}]
  %s16 = sld [smem:[#allocation0]]
  $region117: #{netmodel_forward.1} parent=0
    _
  %s18 = ssub.s32 1, %s16
  %s19 = scalar_select 0, %s18, %s16
  %v20 = vstv %s14
  %21 = vst [vmem:[#allocation14] sm:$0x1] %v20
  loop: start=0, step=1, limit=5
  $region2: #{netmodel_forward.1} parent=0 // loop_pre_header
    _
  $region3: #{netmodel_forward.1} parent=0 // loop_header
    %s23 = sphi 0, %s27
    %p24 = scmp.ge.s32.totalorder %s23, 5
    %s30 = sphi 0, %s42
    %s31 = sphi 0, %s38
    %s32 = sphi 0, %s30
    %s33 = sphi 0, %s31
    %s34 = sphi 0, %s32
    %s35 = sphi 0, %s33
    %s45 = sphi 0, %s47
    %s48 = sphi 0, %s45
    %s49 = sphi 0, %s48
    %s65 = sphi 0, %s49
    %s71 = sphi 0, %s73
    %s74 = sphi 0, %s71
    %s75 = sphi 0, %s74
    %s91 = sphi 0, %s75
    %s95 = sphi 0, %s95
    %s97 = sphi 0, %s95
    %s98 = sphi 0, %s97
    %s112 = sphi 0, %s98
    %s116 = sphi 0, %s116
    %s118 = sphi 0, %s116
    %s119 = sphi 0, %s118
    %s133 = sphi 0, %s119
    %s137 = sphi 0, %s137
    %s139 = sphi 0, %s137
    %s140 = sphi 0, %s139
    %s154 = sphi 0, %s140
    %s158 = sphi 0, %s158
    %s160 = sphi 0, %s158
    %s161 = sphi 0, %s160
    %s175 = sphi 0, %s161
    %s179 = sphi 0, %s179
    %s181 = sphi 0, %s179
    %s182 = sphi 0, %s181
    %s196 = sphi 0, %s182
    %s200 = sphi 0, %s200
    %s202 = sphi 0, %s200
    %s203 = sphi 0, %s202
    %s217 = sphi 0, %s203
    %s221 = sphi 0, %s221
    %s223 = sphi 0, %s221
    %s224 = sphi 0, %s223
    %s238 = sphi 0, %s224
    %s242 = sphi 0, %s242
    %s244 = sphi 0, %s242
    %s245 = sphi 0, %s244
    %s259 = sphi 0, %s245
    %s263 = sphi 0, %s263
    %s265 = sphi 0, %s263
    %s266 = sphi 0, %s265
    %s280 = sphi 0, %s266
    %s284 = sphi 0, %s284
    %s286 = sphi 0, %s284
    %s287 = sphi 0, %s286
    %s301 = sphi 0, %s287
    %s305 = sphi 0, %s305
    %s307 = sphi 0, %s305
    %s308 = sphi 0, %s307
    %s322 = sphi 0, %s308
    %s326 = sphi 0, %s326
    %s328 = sphi 0, %s326
    %s329 = sphi 0, %s328
    %s343 = sphi 0, %s329
    %s347 = sphi 0, %s347
    %s349 = sphi 0, %s347
    %s350 = sphi 0, %s349
    %s364 = sphi 0, %s350
    %s370 = sphi 0, %s372
    %s373 = sphi 0, %s370
    %s374 = sphi 0, %s373
    %s390 = sphi 0, %s374
  $region4: #{netmodel_forward.1} parent=0 // loop_header_branch
    %26 = sbr.rel (%p24) target = $region8
  $region5: #{netmodel_forward.1} parent=0 // loop_body
    %s28 = ssub.s32 %s23, 1
    %s29 = ssub.s32 %s23, 2
    %s36 = sadd.s32 1, %s31
    %p37 = scmp.ge.s32.totalorder %s36, 1
    %s38 = scalar_select %p37, 0, %s36
    %s39 = sadd.s32 1, %s30
    %s40 = scalar_select %p37, %s39, %s30
    %p41 = scmp.ge.s32.totalorder %s40, 3
    %s42 = scalar_select %p41, 0, %s40
    %s43 = ssub.s32 %s31, %s38
    %p44 = scmp.eq.s32.totalorder %s43, 0
    %s46 = sadd.s32 %s45, 1
    %s47 = scalar_select %p44, %s45, %s46
    %p50 = pneg %p44
    %p51 = scmp.eq.s32.totalorder %s23, 2
    %p52 = por %p50, %p51
    %p53 = scmp.ne.s32.totalorder %s45, %s48
    %p54 = scmp.eq.s32.totalorder %s23, 0
    %p55 = por %p53, %p54
    %p56 = scmp.ne.s32.totalorder %s45, %s48
    %p57 = scmp.eq.s32.totalorder %s28, 2
    %p58 = por %p56, %p57
    %p59 = scmp.ne.s32.totalorder %s48, %s49
    %p60 = scmp.eq.s32.totalorder %s28, 0
    %p61 = por %p59, %p60
    %p62 = scmp.ne.s32.totalorder %s48, %s49
    %p63 = scmp.eq.s32.totalorder %s29, 2
    %p64 = por %p62, %p63
    %p66 = scmp.ne.s32.totalorder %s49, %s65
    %p67 = scmp.eq.s32.totalorder %s29, 0
    %p68 = por %p66, %p67
    %s69 = ssub.s32 %s31, %s38
    %p70 = scmp.eq.s32.totalorder %s69, 0
    %s72 = sadd.s32 %s71, 1
    %s73 = scalar_select %p70, %s71, %s72
    %p76 = pneg %p70
    %p77 = scmp.eq.s32.totalorder %s23, 2
    %p78 = por %p76, %p77
    %p79 = scmp.ne.s32.totalorder %s71, %s74
    %p80 = scmp.eq.s32.totalorder %s23, 0
    %p81 = por %p79, %p80
    %p82 = scmp.ne.s32.totalorder %s71, %s74
    %p83 = scmp.eq.s32.totalorder %s28, 2
    %p84 = por %p82, %p83
    %p85 = scmp.ne.s32.totalorder %s74, %s75
    %p86 = scmp.eq.s32.totalorder %s28, 0
    %p87 = por %p85, %p86
    %p88 = scmp.ne.s32.totalorder %s74, %s75
    %p89 = scmp.eq.s32.totalorder %s29, 2
    %p90 = por %p88, %p89
    %p92 = scmp.ne.s32.totalorder %s75, %s91
    %p93 = scmp.eq.s32.totalorder %s29, 0
    %p94 = por %p92, %p93
    %s96 = sadd.s32 %s95, 1
    %p99 = scmp.eq.s32.totalorder %s23, 2
    %p100 = scmp.ne.s32.totalorder %s95, %s97
    %p101 = scmp.eq.s32.totalorder %s23, 0
    %p102 = por %p100, %p101
    %p103 = scmp.ne.s32.totalorder %s95, %s97
    %p104 = scmp.eq.s32.totalorder %s28, 2
    %p105 = por %p103, %p104
    %p106 = scmp.ne.s32.totalorder %s97, %s98
    %p107 = scmp.eq.s32.totalorder %s28, 0
    %p108 = por %p106, %p107
    %p109 = scmp.ne.s32.totalorder %s97, %s98
    %p110 = scmp.eq.s32.totalorder %s29, 2
    %p111 = por %p109, %p110
    %p113 = scmp.ne.s32.totalorder %s98, %s112
    %p114 = scmp.eq.s32.totalorder %s29, 0
    %p115 = por %p113, %p114
    %s117 = sadd.s32 %s116, 1
    %p120 = scmp.eq.s32.totalorder %s23, 2
    %p121 = scmp.ne.s32.totalorder %s116, %s118
    %p122 = scmp.eq.s32.totalorder %s23, 0
    %p123 = por %p121, %p122
    %p124 = scmp.ne.s32.totalorder %s116, %s118
    %p125 = scmp.eq.s32.totalorder %s28, 2
    %p126 = por %p124, %p125
    %p127 = scmp.ne.s32.totalorder %s118, %s119
    %p128 = scmp.eq.s32.totalorder %s28, 0
    %p129 = por %p127, %p128
    %p130 = scmp.ne.s32.totalorder %s118, %s119
    %p131 = scmp.eq.s32.totalorder %s29, 2
    %p132 = por %p130, %p131
    %p134 = scmp.ne.s32.totalorder %s119, %s133
    %p135 = scmp.eq.s32.totalorder %s29, 0
    %p136 = por %p134, %p135
    %s138 = sadd.s32 %s137, 1
    %p141 = scmp.eq.s32.totalorder %s23, 2
    %p142 = scmp.ne.s32.totalorder %s137, %s139
    %p143 = scmp.eq.s32.totalorder %s23, 0
    %p144 = por %p142, %p143
    %p145 = scmp.ne.s32.totalorder %s137, %s139
    %p146 = scmp.eq.s32.totalorder %s28, 2
    %p147 = por %p145, %p146
    %p148 = scmp.ne.s32.totalorder %s139, %s140
    %p149 = scmp.eq.s32.totalorder %s28, 0
    %p150 = por %p148, %p149
    %p151 = scmp.ne.s32.totalorder %s139, %s140
    %p152 = scmp.eq.s32.totalorder %s29, 2
    %p153 = por %p151, %p152
    %p155 = scmp.ne.s32.totalorder %s140, %s154
    %p156 = scmp.eq.s32.totalorder %s29, 0
    %p157 = por %p155, %p156
    %s159 = sadd.s32 %s158, 1
    %p162 = scmp.eq.s32.totalorder %s23, 2
    %p163 = scmp.ne.s32.totalorder %s158, %s160
    %p164 = scmp.eq.s32.totalorder %s23, 0
    %p165 = por %p163, %p164
    %p166 = scmp.ne.s32.totalorder %s158, %s160
    %p167 = scmp.eq.s32.totalorder %s28, 2
    %p168 = por %p166, %p167
    %p169 = scmp.ne.s32.totalorder %s160, %s161
    %p170 = scmp.eq.s32.totalorder %s28, 0
    %p171 = por %p169, %p170
    %p172 = scmp.ne.s32.totalorder %s160, %s161
    %p173 = scmp.eq.s32.totalorder %s29, 2
    %p174 = por %p172, %p173
    %p176 = scmp.ne.s32.totalorder %s161, %s175
    %p177 = scmp.eq.s32.totalorder %s29, 0
    %p178 = por %p176, %p177
    %s180 = sadd.s32 %s179, 1
    %p183 = scmp.eq.s32.totalorder %s23, 2
    %p184 = scmp.ne.s32.totalorder %s179, %s181
    %p185 = scmp.eq.s32.totalorder %s23, 0
    %p186 = por %p184, %p185
    %p187 = scmp.ne.s32.totalorder %s179, %s181
    %p188 = scmp.eq.s32.totalorder %s28, 2
    %p189 = por %p187, %p188
    %p190 = scmp.ne.s32.totalorder %s181, %s182
    %p191 = scmp.eq.s32.totalorder %s28, 0
    %p192 = por %p190, %p191
    %p193 = scmp.ne.s32.totalorder %s181, %s182
    %p194 = scmp.eq.s32.totalorder %s29, 2
    %p195 = por %p193, %p194
    %p197 = scmp.ne.s32.totalorder %s182, %s196
    %p198 = scmp.eq.s32.totalorder %s29, 0
    %p199 = por %p197, %p198
    %s201 = sadd.s32 %s200, 1
    %p204 = scmp.eq.s32.totalorder %s23, 2
    %p205 = scmp.ne.s32.totalorder %s200, %s202
    %p206 = scmp.eq.s32.totalorder %s23, 0
    %p207 = por %p205, %p206
    %p208 = scmp.ne.s32.totalorder %s200, %s202
    %p209 = scmp.eq.s32.totalorder %s28, 2
    %p210 = por %p208, %p209
    %p211 = scmp.ne.s32.totalorder %s202, %s203
    %p212 = scmp.eq.s32.totalorder %s28, 0
    %p213 = por %p211, %p212
    %p214 = scmp.ne.s32.totalorder %s202, %s203
    %p215 = scmp.eq.s32.totalorder %s29, 2
    %p216 = por %p214, %p215
    %p218 = scmp.ne.s32.totalorder %s203, %s217
    %p219 = scmp.eq.s32.totalorder %s29, 0
    %p220 = por %p218, %p219
    %s222 = sadd.s32 %s221, 1
    %p225 = scmp.eq.s32.totalorder %s23, 2
    %p226 = scmp.ne.s32.totalorder %s221, %s223
    %p227 = scmp.eq.s32.totalorder %s23, 0
    %p228 = por %p226, %p227
    %p229 = scmp.ne.s32.totalorder %s221, %s223
    %p230 = scmp.eq.s32.totalorder %s28, 2
    %p231 = por %p229, %p230
    %p232 = scmp.ne.s32.totalorder %s223, %s224
    %p233 = scmp.eq.s32.totalorder %s28, 0
    %p234 = por %p232, %p233
    %p235 = scmp.ne.s32.totalorder %s223, %s224
    %p236 = scmp.eq.s32.totalorder %s29, 2
    %p237 = por %p235, %p236
    %p239 = scmp.ne.s32.totalorder %s224, %s238
    %p240 = scmp.eq.s32.totalorder %s29, 0
    %p241 = por %p239, %p240
    %s243 = sadd.s32 %s242, 1
    %p246 = scmp.eq.s32.totalorder %s23, 2
    %p247 = scmp.ne.s32.totalorder %s242, %s244
    %p248 = scmp.eq.s32.totalorder %s23, 0
    %p249 = por %p247, %p248
    %p250 = scmp.ne.s32.totalorder %s242, %s244
    %p251 = scmp.eq.s32.totalorder %s28, 2
    %p252 = por %p250, %p251
    %p253 = scmp.ne.s32.totalorder %s244, %s245
    %p254 = scmp.eq.s32.totalorder %s28, 0
    %p255 = por %p253, %p254
    %p256 = scmp.ne.s32.totalorder %s244, %s245
    %p257 = scmp.eq.s32.totalorder %s29, 2
    %p258 = por %p256, %p257
    %p260 = scmp.ne.s32.totalorder %s245, %s259
    %p261 = scmp.eq.s32.totalorder %s29, 0
    %p262 = por %p260, %p261
    %s264 = sadd.s32 %s263, 1
    %p267 = scmp.eq.s32.totalorder %s23, 2
    %p268 = scmp.ne.s32.totalorder %s263, %s265
    %p269 = scmp.eq.s32.totalorder %s23, 0
    %p270 = por %p268, %p269
    %p271 = scmp.ne.s32.totalorder %s263, %s265
    %p272 = scmp.eq.s32.totalorder %s28, 2
    %p273 = por %p271, %p272
    %p274 = scmp.ne.s32.totalorder %s265, %s266
    %p275 = scmp.eq.s32.totalorder %s28, 0
    %p276 = por %p274, %p275
    %p277 = scmp.ne.s32.totalorder %s265, %s266
    %p278 = scmp.eq.s32.totalorder %s29, 2
    %p279 = por %p277, %p278
    %p281 = scmp.ne.s32.totalorder %s266, %s280
    %p282 = scmp.eq.s32.totalorder %s29, 0
    %p283 = por %p281, %p282
    %s285 = sadd.s32 %s284, 1
    %p288 = scmp.eq.s32.totalorder %s23, 2
    %p289 = scmp.ne.s32.totalorder %s284, %s286
    %p290 = scmp.eq.s32.totalorder %s23, 0
    %p291 = por %p289, %p290
    %p292 = scmp.ne.s32.totalorder %s284, %s286
    %p293 = scmp.eq.s32.totalorder %s28, 2
    %p294 = por %p292, %p293
    %p295 = scmp.ne.s32.totalorder %s286, %s287
    %p296 = scmp.eq.s32.totalorder %s28, 0
    %p297 = por %p295, %p296
    %p298 = scmp.ne.s32.totalorder %s286, %s287
    %p299 = scmp.eq.s32.totalorder %s29, 2
    %p300 = por %p298, %p299
    %p302 = scmp.ne.s32.totalorder %s287, %s301
    %p303 = scmp.eq.s32.totalorder %s29, 0
    %p304 = por %p302, %p303
    %s306 = sadd.s32 %s305, 1
    %p309 = scmp.eq.s32.totalorder %s23, 2
    %p310 = scmp.ne.s32.totalorder %s305, %s307
    %p311 = scmp.eq.s32.totalorder %s23, 0
    %p312 = por %p310, %p311
    %p313 = scmp.ne.s32.totalorder %s305, %s307
    %p314 = scmp.eq.s32.totalorder %s28, 2
    %p315 = por %p313, %p314
    %p316 = scmp.ne.s32.totalorder %s307, %s308
    %p317 = scmp.eq.s32.totalorder %s28, 0
    %p318 = por %p316, %p317
    %p319 = scmp.ne.s32.totalorder %s307, %s308
    %p320 = scmp.eq.s32.totalorder %s29, 2
    %p321 = por %p319, %p320
    %p323 = scmp.ne.s32.totalorder %s308, %s322
    %p324 = scmp.eq.s32.totalorder %s29, 0
    %p325 = por %p323, %p324
    %s327 = sadd.s32 %s326, 1
    %p330 = scmp.eq.s32.totalorder %s23, 2
    %p331 = scmp.ne.s32.totalorder %s326, %s328
    %p332 = scmp.eq.s32.totalorder %s23, 0
    %p333 = por %p331, %p332
    %p334 = scmp.ne.s32.totalorder %s326, %s328
    %p335 = scmp.eq.s32.totalorder %s28, 2
    %p336 = por %p334, %p335
    %p337 = scmp.ne.s32.totalorder %s328, %s329
    %p338 = scmp.eq.s32.totalorder %s28, 0
    %p339 = por %p337, %p338
    %p340 = scmp.ne.s32.totalorder %s328, %s329
    %p341 = scmp.eq.s32.totalorder %s29, 2
    %p342 = por %p340, %p341
    %p344 = scmp.ne.s32.totalorder %s329, %s343
    %p345 = scmp.eq.s32.totalorder %s29, 0
    %p346 = por %p344, %p345
    %s348 = sadd.s32 %s347, 1
    %p351 = scmp.eq.s32.totalorder %s23, 2
    %p352 = scmp.ne.s32.totalorder %s347, %s349
    %p353 = scmp.eq.s32.totalorder %s23, 0
    %p354 = por %p352, %p353
    %p355 = scmp.ne.s32.totalorder %s347, %s349
    %p356 = scmp.eq.s32.totalorder %s28, 2
    %p357 = por %p355, %p356
    %p358 = scmp.ne.s32.totalorder %s349, %s350
    %p359 = scmp.eq.s32.totalorder %s28, 0
    %p360 = por %p358, %p359
    %p361 = scmp.ne.s32.totalorder %s349, %s350
    %p362 = scmp.eq.s32.totalorder %s29, 2
    %p363 = por %p361, %p362
    %p365 = scmp.ne.s32.totalorder %s350, %s364
    %p366 = scmp.eq.s32.totalorder %s29, 0
    %p367 = por %p365, %p366
    %s368 = ssub.s32 %s31, %s38
    %p369 = scmp.eq.s32.totalorder %s368, 0
    %s371 = sadd.s32 %s370, 1
    %s372 = scalar_select %p369, %s370, %s371
    %p375 = pneg %p369
    %p376 = scmp.eq.s32.totalorder %s23, 2
    %p377 = por %p375, %p376
    %p378 = scmp.ne.s32.totalorder %s370, %s373
    %p379 = scmp.eq.s32.totalorder %s23, 0
    %p380 = por %p378, %p379
    %p381 = scmp.ne.s32.totalorder %s370, %s373
    %p382 = scmp.eq.s32.totalorder %s28, 2
    %p383 = por %p381, %p382
    %p384 = scmp.ne.s32.totalorder %s373, %s374
    %p385 = scmp.eq.s32.totalorder %s28, 0
    %p386 = por %p384, %p385
    %p387 = scmp.ne.s32.totalorder %s373, %s374
    %p388 = scmp.eq.s32.totalorder %s29, 2
    %p389 = por %p387, %p388
    %p391 = scmp.ne.s32.totalorder %s374, %s390
    %p392 = scmp.eq.s32.totalorder %s29, 0
    %p393 = por %p391, %p392
    %p394 = scmp.le.s32.totalorder 1, %s23
    %p395 = scmp.lt.s32.totalorder %s23, 4
    %p396 = pnand %p394, %p395
    %p397 = pneg %p396
    // Predicated region
    $region9: #{netmodel_forward.1} parent=5 // pred_check
      _
    $region10: #{netmodel_forward.1} parent=5 // pred_check_branch
      %399 = sbr.rel (%p396) target = $region12
    $region11: #{netmodel_forward.1} parent=5 // pred_region
      %s400 = ssub.s32 %s23, 1
      // Predicated region
      $region13: #{netmodel_forward.1} parent=11 // pred_check
        %p401 = pneg %p61
      $region14: #{netmodel_forward.1} parent=11 // pred_check_branch
        %403 = sbr.rel (%p401) target = $region16
      $region15: #{netmodel_forward.1} parent=11 // pred_region
        %p404 = scmp.lt.s32.totalorder %s33, 0
        %s405 = scalar_select %p404, %s33, 0
        %s406 = smul.addr %s405, 8
        %s407 = scalar_lea.vmem %s0, %s406
      $region16: #{netmodel_forward.1} parent=11 // pred_fallthru
        _
      // Predicated region
      $region17: #{netmodel_forward.1} parent=11 // pred_check
        %p408 = pneg %p87
      $region18: #{netmodel_forward.1} parent=11 // pred_check_branch
        %410 = sbr.rel (%p408) target = $region20
      $region19: #{netmodel_forward.1} parent=11 // pred_region
        %p411 = scmp.lt.s32.totalorder %s33, 0
        %s412 = scalar_select %p411, %s33, 0
        %s413 = smul.addr %s412, 8
        %s414 = scalar_lea.vmem %s1, %s413
      $region20: #{netmodel_forward.1} parent=11 // pred_fallthru
        _
      // Predicated region
      $region21: #{netmodel_forward.1} parent=11 // pred_check
        %p415 = pneg %p108
      $region22: #{netmodel_forward.1} parent=11 // pred_check_branch
        %417 = sbr.rel (%p415) target = $region24
      $region23: #{netmodel_forward.1} parent=11 // pred_region
        _
      $region24: #{netmodel_forward.1} parent=11 // pred_fallthru
        _
      // Predicated region
      $region25: #{netmodel_forward.1} parent=11 // pred_check
        %p418 = pneg %p129
      $region26: #{netmodel_forward.1} parent=11 // pred_check_branch
        %420 = sbr.rel (%p418) target = $region28
      $region27: #{netmodel_forward.1} parent=11 // pred_region
        _
      $region28: #{netmodel_forward.1} parent=11 // pred_fallthru
        _
      // Predicated region
      $region29: #{netmodel_forward.1} parent=11 // pred_check
        %p421 = pneg %p150
      $region30: #{netmodel_forward.1} parent=11 // pred_check_branch
        %423 = sbr.rel (%p421) target = $region32
      $region31: #{netmodel_forward.1} parent=11 // pred_region
        _
      $region32: #{netmodel_forward.1} parent=11 // pred_fallthru
        _
      // Predicated region
      $region33: #{netmodel_forward.1} parent=11 // pred_check
        %p424 = pneg %p171
      $region34: #{netmodel_forward.1} parent=11 // pred_check_branch
        %426 = sbr.rel (%p424) target = $region36
      $region35: #{netmodel_forward.1} parent=11 // pred_region
        _
      $region36: #{netmodel_forward.1} parent=11 // pred_fallthru
        _
      // Predicated region
      $region37: #{netmodel_forward.1} parent=11 // pred_check
        %p427 = pneg %p192
      $region38: #{netmodel_forward.1} parent=11 // pred_check_branch
        %429 = sbr.rel (%p427) target = $region40
      $region39: #{netmodel_forward.1} parent=11 // pred_region
        _
      $region40: #{netmodel_forward.1} parent=11 // pred_fallthru
        _
      // Predicated region
      $region41: #{netmodel_forward.1} parent=11 // pred_check
        %p430 = pneg %p213
      $region42: #{netmodel_forward.1} parent=11 // pred_check_branch
        %432 = sbr.rel (%p430) target = $region44
      $region43: #{netmodel_forward.1} parent=11 // pred_region
        _
      $region44: #{netmodel_forward.1} parent=11 // pred_fallthru
        _
      // Predicated region
      $region45: #{netmodel_forward.1} parent=11 // pred_check
        %p433 = pneg %p234
      $region46: #{netmodel_forward.1} parent=11 // pred_check_branch
        %435 = sbr.rel (%p433) target = $region48
      $region47: #{netmodel_forward.1} parent=11 // pred_region
        _
      $region48: #{netmodel_forward.1} parent=11 // pred_fallthru
        _
      // Predicated region
      $region49: #{netmodel_forward.1} parent=11 // pred_check
        %p436 = pneg %p255
      $region50: #{netmodel_forward.1} parent=11 // pred_check_branch
        %438 = sbr.rel (%p436) target = $region52
      $region51: #{netmodel_forward.1} parent=11 // pred_region
        _
      $region52: #{netmodel_forward.1} parent=11 // pred_fallthru
        _
      // Predicated region
      $region53: #{netmodel_forward.1} parent=11 // pred_check
        %p439 = pneg %p276
      $region54: #{netmodel_forward.1} parent=11 // pred_check_branch
        %441 = sbr.rel (%p439) target = $region56
      $region55: #{netmodel_forward.1} parent=11 // pred_region
        _
      $region56: #{netmodel_forward.1} parent=11 // pred_fallthru
        _
      // Predicated region
      $region57: #{netmodel_forward.1} parent=11 // pred_check
        %p442 = pneg %p297
      $region58: #{netmodel_forward.1} parent=11 // pred_check_branch
        %444 = sbr.rel (%p442) target = $region60
      $region59: #{netmodel_forward.1} parent=11 // pred_region
        _
      $region60: #{netmodel_forward.1} parent=11 // pred_fallthru
        _
      // Predicated region
      $region61: #{netmodel_forward.1} parent=11 // pred_check
        %p445 = pneg %p318
      $region62: #{netmodel_forward.1} parent=11 // pred_check_branch
        %447 = sbr.rel (%p445) target = $region64
      $region63: #{netmodel_forward.1} parent=11 // pred_region
        _
      $region64: #{netmodel_forward.1} parent=11 // pred_fallthru
        _
      // Predicated region
      $region65: #{netmodel_forward.1} parent=11 // pred_check
        %p448 = pneg %p339
      $region66: #{netmodel_forward.1} parent=11 // pred_check_branch
        %450 = sbr.rel (%p448) target = $region68
      $region67: #{netmodel_forward.1} parent=11 // pred_region
        _
      $region68: #{netmodel_forward.1} parent=11 // pred_fallthru
        _
      // Predicated region
      $region69: #{netmodel_forward.1} parent=11 // pred_check
        %p451 = pneg %p360
      $region70: #{netmodel_forward.1} parent=11 // pred_check_branch
        %453 = sbr.rel (%p451) target = $region72
      $region71: #{netmodel_forward.1} parent=11 // pred_region
        _
      $region72: #{netmodel_forward.1} parent=11 // pred_fallthru
        _
    $region12: #{netmodel_forward.1} parent=5 // pred_fallthru
      _
    %p454 = scmp.lt.s32.totalorder %s23, 3
    // Predicated region
    $region73: #{netmodel_forward.1} parent=5 // pred_check
      %p455 = pneg %p454
    $region74: #{netmodel_forward.1} parent=5 // pred_check_branch
      %457 = sbr.rel (%p455) target = $region76
    $region75: #{netmodel_forward.1} parent=5 // pred_region
      _
    $region76: #{netmodel_forward.1} parent=5 // pred_fallthru
      _
    %p458 = scmp.le.s32.totalorder 1, %s23
    %p459 = scmp.lt.s32.totalorder %s23, 4
    %p460 = pnand %p458, %p459
    %p461 = pneg %p460
    // Predicated region
    $region77: #{netmodel_forward.1} parent=5 // pred_check
      _
    $region78: #{netmodel_forward.1} parent=5 // pred_check_branch
      %463 = sbr.rel (%p460) target = $region80
    $region79: #{netmodel_forward.1} parent=5 // pred_region
      %s464 = ssub.s32 %s23, 1
      %p465 = scmp.lt.s32.totalorder %s33, 0
      %s466 = scalar_select %p465, %s33, 0
      %s467 = smul.addr %s466, 8
      %s468 = scalar_lea.vmem %s0, %s467
      %p469 = pneg %p61
      %p470 = pneg %p58
      %p471 = scmp.lt.s32.totalorder %s33, 0
      %s472 = scalar_select %p471, %s33, 0
      %s473 = smul.addr %s472, 8
      %s474 = scalar_lea.vmem %s1, %s473
      %p475 = pneg %p87
      %p476 = pneg %p84
      %p477 = pneg %p108
      %p478 = pneg %p105
      %p479 = pneg %p129
      %p480 = pneg %p126
      %p481 = pneg %p150
      %p482 = pneg %p147
      %p483 = pneg %p171
      %p484 = pneg %p168
      %p485 = pneg %p192
      %p486 = pneg %p189
      %p487 = pneg %p213
      %p488 = pneg %p210
      %p489 = pneg %p234
      %p490 = pneg %p231
      %p491 = pneg %p255
      %p492 = pneg %p252
      %p493 = pneg %p276
      %p494 = pneg %p273
      %p495 = pneg %p297
      %p496 = pneg %p294
      %p497 = pneg %p318
      %p498 = pneg %p315
      %p499 = pneg %p339
      %p500 = pneg %p336
      %p501 = pneg %p360
      %p502 = pneg %p357
      %p503 = pneg %p386
      %p504 = pneg %p383
      %p505 = scmp.lt.s32.totalorder %s33, 0
      %s506 = scalar_select %p505, %s33, 0
      %s507 = smul.addr %s506, 8
      %s508 = scalar_lea.vmem %s15, %s507
      %p509 = scmp.lt.s32.totalorder %s33, 0
      %s510 = scalar_select %p509, %s33, 0
      %s511 = smul.addr %s510, 8
      %s512 = scalar_lea.vmem %s0, %s511
      %p513 = scmp.lt.s32.totalorder %s33, 0
      %s514 = scalar_select %p513, %s33, 0
      %s515 = smul.addr %s514, 8
      %s516 = scalar_lea.vmem %s1, %s515
      %p517 = scmp.lt.s32.totalorder %s33, 0
      %s518 = scalar_select %p517, %s33, 0
      %s519 = smul.addr %s518, 8
      %s520 = scalar_lea.vmem %s15, %s519
      %v521 = vld [vmem:[%s512] sm:$0xff]
      %v522 = vld [vmem:[%s516] sm:$0xff]
      %p523 = scmp.eq.s32.totalorder %s32, 0
      %p524 = scmp.eq.s32.totalorder %s33, 0
      %p525 = pnand %p523, %p524
      %p526 = pneg %p525
      // Predicated region
      $region81: #{netmodel_forward.1} parent=79 // pred_check
        _
      $region82: #{netmodel_forward.1} parent=79 // pred_check_branch
        %528 = sbr.rel (%p525) target = $region84
      $region83: #{netmodel_forward.1} parent=79 // pred_region
        %vm529 = vcmask 163840
        %530 = vst.msk [vmem:[#allocation2] sm:$0x1] %vm529, 0.0
        %531 = vst.msk [vmem:[#allocation3] sm:$0x1] %vm529, 0.0
        %vm532 = vcmask 24576
        %533 = vst.msk [vmem:[#allocation4] sm:$0x1] %vm532, 0.0
        %534 = vst.msk [vmem:[#allocation5] sm:$0x1] %vm532, 0.0
      $region84: #{netmodel_forward.1} parent=79 // pred_fallthru
        _
      // Predicated region
      $region85: #{netmodel_forward.1} parent=79 // pred_check
        %p535 = pneg %p523
      $region86: #{netmodel_forward.1} parent=79 // pred_check_branch
        %537 = sbr.rel (%p535) target = $region88
      $region87: #{netmodel_forward.1} parent=79 // pred_region
        %v538 = vld [vmem:[#allocation2] sm:$0x1]
        %vm539 = vcmask 171008
        %v540 = vsel %vm539, %v521, 0.0
        %v541 = vrot.slane %v540, 4
        %v542 = vadd.f32 %v540, %v541
        %v543 = vrot.slane %v542, 2
        %v544 = vadd.f32 %v542, %v543
        %v545 = vrot.slane %v544, 1
        %v546 = vadd.f32 %v544, %v545
        %v547 = vadd.f32 %v538, %v546
        %vm548 = vcmask 163840
        %549 = vst.msk [vmem:[#allocation2] sm:$0x1] %vm548, %v547
        %v550 = vld [vmem:[#allocation3] sm:$0x1]
        %v551 = vmul.f32 %v521, %v521
        %v552 = vsel %vm539, %v551, 0.0
        %v553 = vrot.slane %v552, 4
        %v554 = vadd.f32 %v552, %v553
        %v555 = vrot.slane %v554, 2
        %v556 = vadd.f32 %v554, %v555
        %v557 = vrot.slane %v556, 1
        %v558 = vadd.f32 %v556, %v557
        %v559 = vadd.f32 %v550, %v558
        %560 = vst.msk [vmem:[#allocation3] sm:$0x1] %vm548, %v559
        %v561 = vld [vmem:[#allocation4] sm:$0x1]
        %vm562 = vcmask 31744
        %v563 = vsel %vm562, %v522, 0.0
        %v564 = vrot.slane %v563, 4
        %v565 = vadd.f32 %v563, %v564
        %v566 = vrot.slane %v565, 2
        %v567 = vadd.f32 %v565, %v566
        %v568 = vrot.slane %v567, 1
        %v569 = vadd.f32 %v567, %v568
        %v570 = vadd.f32 %v561, %v569
        %vm571 = vcmask 24576
        %572 = vst.msk [vmem:[#allocation4] sm:$0x1] %vm571, %v570
        %v573 = vld [vmem:[#allocation5] sm:$0x1]
        %v574 = vmul.f32 %v522, %v522
        %v575 = vsel %vm562, %v574, 0.0
        %v576 = vrot.slane %v575, 4
        %v577 = vadd.f32 %v575, %v576
        %v578 = vrot.slane %v577, 2
        %v579 = vadd.f32 %v577, %v578
        %v580 = vrot.slane %v579, 1
        %v581 = vadd.f32 %v579, %v580
        %v582 = vadd.f32 %v573, %v581
        %583 = vst.msk [vmem:[#allocation5] sm:$0x1] %vm571, %v582
        %vm584 = vcmask 7168
        %585 = vst.msk [vmem:[%s520] sm:$0xff] %vm584, 0.0
      $region88: #{netmodel_forward.1} parent=79 // pred_fallthru
        _
      %p586 = scmp.eq.s32.totalorder %s32, 1
      %p587 = pnand %p586, %p524
      %p588 = pneg %p587
      // Predicated region
      $region89: #{netmodel_forward.1} parent=79 // pred_check
        _
      $region90: #{netmodel_forward.1} parent=79 // pred_check_branch
        %590 = sbr.rel (%p587) target = $region92
      $region91: #{netmodel_forward.1} parent=79 // pred_region
        %v591 = vld [vmem:[#allocation2] sm:$0x1]
        %v592 = vmul.f32 %v591, 0.125
        %v593 = vld [vmem:[#allocation3] sm:$0x1]
        %v594 = vmul.f32 %v593, 0.125
        %v595 = vmul.f32 %v592, %v592
        %v596 = vsub.f32 %v594, %v595
        %v597 = vmax.f32 %v596, 0.0
        %v598 = vld [vmem:[%s2] sm:$0x1]
        %v599 = vadd.f32 %v597, 1e-05
        %v600 = vrsqrt.pop %v599
        %v601 = vmul.f32 %v598, %v600
        %vm602 = vcmask 163840
        %603 = vst.msk [vmem:[#allocation8] sm:$0x1] %vm602, %v601
        %v604 = vld [vmem:[%s3] sm:$0x1]
        %v605 = vmul.f32 %v592, %v601
        %v606 = vsub.f32 %v604, %v605
        %607 = vst.msk [vmem:[#allocation9] sm:$0x1] %vm602, %v606
        %v608 = vld [vmem:[#allocation4] sm:$0x1]
        %v609 = vmul.f32 %v608, 0.125
        %v610 = vld [vmem:[#allocation5] sm:$0x1]
        %v611 = vmul.f32 %v610, 0.125
        %v612 = vmul.f32 %v609, %v609
        %v613 = vsub.f32 %v611, %v612
        %v614 = vmax.f32 %v613, 0.0
        %v615 = vld [vmem:[%s4] sm:$0x1]
        %v616 = vadd.f32 %v614, 1e-05
        %v617 = vrsqrt.pop %v616
        %v618 = vmul.f32 %v615, %v617
        %vm619 = vcmask 24576
        %620 = vst.msk [vmem:[#allocation10] sm:$0x1] %vm619, %v618
        %v621 = vld [vmem:[%s5] sm:$0x1]
        %v622 = vmul.f32 %v609, %v618
        %v623 = vsub.f32 %v621, %v622
        %624 = vst.msk [vmem:[#allocation11] sm:$0x1] %vm619, %v623
        %vm625 = vcmask 253952
        %626 = vst.msk [vmem:[#allocation6] sm:$0x1] %vm625, 0.0
        %627 = vst.msk [vmem:[#allocation7] sm:$0x1] %vm625, 0.0
      $region92: #{netmodel_forward.1} parent=79 // pred_fallthru
        _
      // Predicated region
      $region93: #{netmodel_forward.1} parent=79 // pred_check
        %p628 = pneg %p586
      $region94: #{netmodel_forward.1} parent=79 // pred_check_branch
        %630 = sbr.rel (%p628) target = $region96
      $region95: #{netmodel_forward.1} parent=79 // pred_region
        %v631 = vld [vmem:[#allocation8] sm:$0x1]
        %v633 = vlaneseq
        %v634 = vshrl.u32 %v633, 7
        %v635 = vsub.s32 0, %v634
        %v636 = vrot.slane %v631, %v635
        %v638 = vmul.f32 %v521, %v636
        %v639 = vld [vmem:[#allocation9] sm:$0x1]
        %v641 = vlaneseq
        %v642 = vshrl.u32 %v641, 7
        %v643 = vsub.s32 0, %v642
        %v644 = vrot.slane %v639, %v643
        %v646 = vadd.f32 %v638, %v644
        %v647 = vld [vmem:[#allocation10] sm:$0x1]
        %v649 = vlaneseq
        %v650 = vshrl.u32 %v649, 7
        %v651 = vsub.s32 0, %v650
        %v652 = vrot.slane %v647, %v651
        %v654 = vmul.f32 %v522, %v652
        %v655 = vld [vmem:[#allocation11] sm:$0x1]
        %v657 = vlaneseq
        %v658 = vshrl.u32 %v657, 7
        %v659 = vsub.s32 0, %v658
        %v660 = vrot.slane %v655, %v659
        %v662 = vadd.f32 %v654, %v660
        %v663 = vld [vmem:[%s6] sm:$0xff]
        %v664 = vld [vmem:[%s6 + $0x8] sm:$0xff]
        %v665 = vld [vmem:[%s6 + $0x10] sm:$0x1f]
        %v666 = vld [vmem:[%s7] sm:$0xf]
        %vm667 = vcmask 31744
        %v669 = vsel %vm667, %v662, 0
        %vm671 = vcmask 1043456
        %v673 = vsel %vm671, %v666, 0
        %675 = vmatprep.subr.mxu0 0.0
        %676 = vmatpush1.msra.mxu0 %v673
        %677 = vmatprep.subr.mxu0 0.0
        %678 = vmatpush1.msra.mxu0 0.0
        %679 = vmatprep.subr.mxu0 0.0
        %680 = vmatpush1.msra.mxu0 0.0
        %681 = vmatprep.subr.mxu0 0.0
        %682 = vmatpush1.msra.mxu0 0.0
        %683 = vmatprep.subr.mxu0 0.0
        %684 = vmatpush1.msra.mxu0 0.0
        %685 = vmatprep.subr.mxu0 0.0
        %686 = vmatpush1.msra.mxu0 0.0
        %687 = vmatprep.subr.mxu0 0.0
        %688 = vmatpush1.msra.mxu0 0.0
        %689 = vmatprep.subr.mxu0 0.0
        %690 = vmatpush1.msra.mxu0 0.0
        %691 = vmatprep.subr.mxu0 0.0
        %692 = vmatpush1.msra.mxu0 0.0
        %693 = vmatprep.subr.mxu0 0.0
        %694 = vmatpush1.msra.mxu0 0.0
        %695 = vmatprep.subr.mxu0 0.0
        %696 = vmatpush1.msra.mxu0 0.0
        %697 = vmatprep.subr.mxu0 0.0
        %698 = vmatpush1.msra.mxu0 0.0
        %699 = vmatprep.subr.mxu0 0.0
        %700 = vmatpush1.msra.mxu0 0.0
        %701 = vmatprep.subr.mxu0 0.0
        %702 = vmatpush1.msra.mxu0 0.0
        %703 = vmatprep.subr.mxu0 0.0
        %704 = vmatpush1.msra.mxu0 0.0
        %705 = vmatprep.subr.mxu0 0.0
        %706 = vmatpush1.msra.mxu0 0.0
        %707 = vmatprep.subr.mxu0 0.0
        %708 = vmatpush1.msra.mxu0 0.0
        %709 = vmatprep.subr.mxu0 0.0
        %710 = vmatpush1.msra.mxu0 0.0
        %711 = vmatprep.subr.mxu0 0.0
        %712 = vmatpush1.msra.mxu0 0.0
        %713 = vmatprep.subr.mxu0 0.0
        %714 = vmatpush1.msra.mxu0 0.0
        %715 = vmatprep.subr.mxu0 0.0
        %716 = vmatpush1.msra.mxu0 0.0
        %717 = vmatprep.subr.mxu0 0.0
        %718 = vmatpush1.msra.mxu0 0.0
        %719 = vmatprep.subr.mxu0 0.0
        %720 = vmatpush1.msra.mxu0 0.0
        %721 = vmatprep.subr.mxu0 0.0
        %722 = vmatpush1.msra.mxu0 0.0
        %723 = vmatprep.subr.mxu0 0.0
        %724 = vmatpush1.msra.mxu0 0.0
        %725 = vmatprep.subr.mxu0 0.0
        %726 = vmatpush1.msra.mxu0 0.0
        %727 = vmatprep.subr.mxu0 0.0
        %728 = vmatpush1.msra.mxu0 0.0
        %729 = vmatprep.subr.mxu0 0.0
        %730 = vmatpush1.msra.mxu0 0.0
        %731 = vmatprep.subr.mxu0 0.0
        %732 = vmatpush1.msra.mxu0 0.0
        %733 = vmatprep.subr.mxu0 0.0
        %734 = vmatpush1.msra.mxu0 0.0
        %735 = vmatprep.subr.mxu0 0.0
        %736 = vmatpush1.msra.mxu0 0.0
        %737 = vmatprep.subr.mxu0 0.0
        %738 = vmatpush1.msra.mxu0 0.0
        %739 = vmatprep.mubr.f32.mxu0 0.0
        %740 = vmatmul.mubr.f32.gmra.mrb[0].mxu0 %v669
        %v741 = vpop.f32.mrb[0].mxu0
        %v742 = vadd.f32 0.0, %v741
        %v743 = vpop.f32.mrb[0].mxu0
        %744 = vdwg.mxu0
        %vm745 = vcmask 171008
        %v747 = vsel %vm745, %v646, 0
        %vm749 = vcmask 1044480
        %v751 = vsel %vm749, %v665, 0
        %753 = vmatprep.subr.mxu0 0.0
        %754 = vmatpush1.msra.mxu0 %v663
        %755 = vmatprep.subr.mxu0 0.0
        %756 = vmatpush1.msra.mxu0 %v664
        %757 = vmatprep.subr.mxu0 0.0
        %758 = vmatpush1.msra.mxu0 %v751
        %759 = vmatprep.subr.mxu0 0.0
        %760 = vmatpush1.msra.mxu0 0.0
        %761 = vmatprep.subr.mxu0 0.0
        %762 = vmatpush1.msra.mxu0 0.0
        %763 = vmatprep.subr.mxu0 0.0
        %764 = vmatpush1.msra.mxu0 0.0
        %765 = vmatprep.subr.mxu0 0.0
        %766 = vmatpush1.msra.mxu0 0.0
        %767 = vmatprep.subr.mxu0 0.0
        %768 = vmatpush1.msra.mxu0 0.0
        %769 = vmatprep.subr.mxu0 0.0
        %770 = vmatpush1.msra.mxu0 0.0
        %771 = vmatprep.subr.mxu0 0.0
        %772 = vmatpush1.msra.mxu0 0.0
        %773 = vmatprep.subr.mxu0 0.0
        %774 = vmatpush1.msra.mxu0 0.0
        %775 = vmatprep.subr.mxu0 0.0
        %776 = vmatpush1.msra.mxu0 0.0
        %777 = vmatprep.subr.mxu0 0.0
        %778 = vmatpush1.msra.mxu0 0.0
        %779 = vmatprep.subr.mxu0 0.0
        %780 = vmatpush1.msra.mxu0 0.0
        %781 = vmatprep.subr.mxu0 0.0
        %782 = vmatpush1.msra.mxu0 0.0
        %783 = vmatprep.subr.mxu0 0.0
        %784 = vmatpush1.msra.mxu0 0.0
        %785 = vmatprep.subr.mxu0 0.0
        %786 = vmatpush1.msra.mxu0 0.0
        %787 = vmatprep.subr.mxu0 0.0
        %788 = vmatpush1.msra.mxu0 0.0
        %789 = vmatprep.subr.mxu0 0.0
        %790 = vmatpush1.msra.mxu0 0.0
        %791 = vmatprep.subr.mxu0 0.0
        %792 = vmatpush1.msra.mxu0 0.0
        %793 = vmatprep.subr.mxu0 0.0
        %794 = vmatpush1.msra.mxu0 0.0
        %795 = vmatprep.subr.mxu0 0.0
        %796 = vmatpush1.msra.mxu0 0.0
        %797 = vmatprep.subr.mxu0 0.0
        %798 = vmatpush1.msra.mxu0 0.0
        %799 = vmatprep.subr.mxu0 0.0
        %800 = vmatpush1.msra.mxu0 0.0
        %801 = vmatprep.subr.mxu0 0.0
        %802 = vmatpush1.msra.mxu0 0.0
        %803 = vmatprep.subr.mxu0 0.0
        %804 = vmatpush1.msra.mxu0 0.0
        %805 = vmatprep.subr.mxu0 0.0
        %806 = vmatpush1.msra.mxu0 0.0
        %807 = vmatprep.subr.mxu0 0.0
        %808 = vmatpush1.msra.mxu0 0.0
        %809 = vmatprep.subr.mxu0 0.0
        %810 = vmatpush1.msra.mxu0 0.0
        %811 = vmatprep.subr.mxu0 0.0
        %812 = vmatpush1.msra.mxu0 0.0
        %813 = vmatprep.subr.mxu0 0.0
        %814 = vmatpush1.msra.mxu0 0.0
        %815 = vmatprep.subr.mxu0 0.0
        %816 = vmatpush1.msra.mxu0 0.0
        %817 = vmatprep.mubr.f32.mxu0 0.0
        %818 = vmatmul.mubr.f32.gmra.mrb[0].mxu0 %v747
        %v819 = vpop.f32.mrb[0].mxu0
        %v820 = vadd.f32 %v742, %v819
        %v821 = vpop.f32.mrb[0].mxu0
        %822 = vdwg.mxu0
        %v823 = vld [vmem:[%s8] sm:$0x1]
        %v825 = vlaneseq
        %v826 = vshrl.u32 %v825, 7
        %v827 = vsub.s32 0, %v826
        %v828 = vrot.slane %v823, %v827
        %v830 = vadd.f32 %v820, %v828
        %v831 = vmax.f32 %v830, 0.0
        %v832 = vld [vmem:[#allocation6] sm:$0x1]
        %vm833 = vcmask 261120
        %v834 = vsel %vm833, %v831, 0.0
        %v835 = vrot.slane %v834, 4
        %v836 = vadd.f32 %v834, %v835
        %v837 = vrot.slane %v836, 2
        %v838 = vadd.f32 %v836, %v837
        %v839 = vrot.slane %v838, 1
        %v840 = vadd.f32 %v838, %v839
        %v841 = vadd.f32 %v832, %v840
        %vm842 = vcmask 253952
        %843 = vst.msk [vmem:[#allocation6] sm:$0x1] %vm842, %v841
        %v844 = vld [vmem:[#allocation7] sm:$0x1]
        %v845 = vmul.f32 %v831, %v831
        %v846 = vsel %vm833, %v845, 0.0
        %v847 = vrot.slane %v846, 4
        %v848 = vadd.f32 %v846, %v847
        %v849 = vrot.slane %v848, 2
        %v850 = vadd.f32 %v848, %v849
        %v851 = vrot.slane %v850, 1
        %v852 = vadd.f32 %v850, %v851
        %v853 = vadd.f32 %v844, %v852
        %854 = vst.msk [vmem:[#allocation7] sm:$0x1] %vm842, %v853
      $region96: #{netmodel_forward.1} parent=79 // pred_fallthru
        _
      %p855 = scmp.eq.s32.totalorder %s32, 2
      %p856 = pnand %p855, %p524
      %p857 = pneg %p856
      // Predicated region
      $region97: #{netmodel_forward.1} parent=79 // pred_check
        _
      $region98: #{netmodel_forward.1} parent=79 // pred_check_branch
        %859 = sbr.rel (%p856) target = $region100
      $region99: #{netmodel_forward.1} parent=79 // pred_region
        %v860 = vld [vmem:[#allocation6] sm:$0x1]
        %v861 = vmul.f32 %v860, 0.125
        %v862 = vld [vmem:[#allocation7] sm:$0x1]
        %v863 = vmul.f32 %v862, 0.125
        %v864 = vmul.f32 %v861, %v861
        %v865 = vsub.f32 %v863, %v864
        %v866 = vmax.f32 %v865, 0.0
        %v867 = vld [vmem:[%s9] sm:$0x1]
        %v868 = vadd.f32 %v866, 1e-05
        %v869 = vrsqrt.pop %v868
        %v870 = vmul.f32 %v867, %v869
        %vm871 = vcmask 253952
        %872 = vst.msk [vmem:[#allocation12] sm:$0x1] %vm871, %v870
        %v873 = vld [vmem:[%s10] sm:$0x1]
        %v874 = vmul.f32 %v861, %v870
        %v875 = vsub.f32 %v873, %v874
        %876 = vst.msk [vmem:[#allocation13] sm:$0x1] %vm871, %v875
      $region100: #{netmodel_forward.1} parent=79 // pred_fallthru
        _
      // Predicated region
      $region101: #{netmodel_forward.1} parent=79 // pred_check
        %p877 = pneg %p855
      $region102: #{netmodel_forward.1} parent=79 // pred_check_branch
        %879 = sbr.rel (%p877) target = $region104
      $region103: #{netmodel_forward.1} parent=79 // pred_region
        %v880 = vld [vmem:[#allocation8] sm:$0x1]
        %v882 = vlaneseq
        %v883 = vshrl.u32 %v882, 7
        %v884 = vsub.s32 0, %v883
        %v885 = vrot.slane %v880, %v884
        %v887 = vmul.f32 %v521, %v885
        %v888 = vld [vmem:[#allocation9] sm:$0x1]
        %v890 = vlaneseq
        %v891 = vshrl.u32 %v890, 7
        %v892 = vsub.s32 0, %v891
        %v893 = vrot.slane %v888, %v892
        %v895 = vadd.f32 %v887, %v893
        %v896 = vld [vmem:[#allocation10] sm:$0x1]
        %v898 = vlaneseq
        %v899 = vshrl.u32 %v898, 7
        %v900 = vsub.s32 0, %v899
        %v901 = vrot.slane %v896, %v900
        %v903 = vmul.f32 %v522, %v901
        %v904 = vld [vmem:[#allocation11] sm:$0x1]
        %v906 = vlaneseq
        %v907 = vshrl.u32 %v906, 7
        %v908 = vsub.s32 0, %v907
        %v909 = vrot.slane %v904, %v908
        %v911 = vadd.f32 %v903, %v909
        %v912 = vld [vmem:[%s6] sm:$0xff]
        %v913 = vld [vmem:[%s6 + $0x8] sm:$0xff]
        %v914 = vld [vmem:[%s6 + $0x10] sm:$0x1f]
        %v915 = vld [vmem:[%s7] sm:$0xf]
        %vm916 = vcmask 31744
        %v918 = vsel %vm916, %v911, 0
        %vm920 = vcmask 1043456
        %v922 = vsel %vm920, %v915, 0
        %924 = vmatprep.subr.mxu0 0.0
        %925 = vmatpush1.msra.mxu0 %v922
        %926 = vmatprep.subr.mxu0 0.0
        %927 = vmatpush1.msra.mxu0 0.0
        %928 = vmatprep.subr.mxu0 0.0
        %929 = vmatpush1.msra.mxu0 0.0
        %930 = vmatprep.subr.mxu0 0.0
        %931 = vmatpush1.msra.mxu0 0.0
        %932 = vmatprep.subr.mxu0 0.0
        %933 = vmatpush1.msra.mxu0 0.0
        %934 = vmatprep.subr.mxu0 0.0
        %935 = vmatpush1.msra.mxu0 0.0
        %936 = vmatprep.subr.mxu0 0.0
        %937 = vmatpush1.msra.mxu0 0.0
        %938 = vmatprep.subr.mxu0 0.0
        %939 = vmatpush1.msra.mxu0 0.0
        %940 = vmatprep.subr.mxu0 0.0
        %941 = vmatpush1.msra.mxu0 0.0
        %942 = vmatprep.subr.mxu0 0.0
        %943 = vmatpush1.msra.mxu0 0.0
        %944 = vmatprep.subr.mxu0 0.0
        %945 = vmatpush1.msra.mxu0 0.0
        %946 = vmatprep.subr.mxu0 0.0
        %947 = vmatpush1.msra.mxu0 0.0
        %948 = vmatprep.subr.mxu0 0.0
        %949 = vmatpush1.msra.mxu0 0.0
        %950 = vmatprep.subr.mxu0 0.0
        %951 = vmatpush1.msra.mxu0 0.0
        %952 = vmatprep.subr.mxu0 0.0
        %953 = vmatpush1.msra.mxu0 0.0
        %954 = vmatprep.subr.mxu0 0.0
        %955 = vmatpush1.msra.mxu0 0.0
        %956 = vmatprep.subr.mxu0 0.0
        %957 = vmatpush1.msra.mxu0 0.0
        %958 = vmatprep.subr.mxu0 0.0
        %959 = vmatpush1.msra.mxu0 0.0
        %960 = vmatprep.subr.mxu0 0.0
        %961 = vmatpush1.msra.mxu0 0.0
        %962 = vmatprep.subr.mxu0 0.0
        %963 = vmatpush1.msra.mxu0 0.0
        %964 = vmatprep.subr.mxu0 0.0
        %965 = vmatpush1.msra.mxu0 0.0
        %966 = vmatprep.subr.mxu0 0.0
        %967 = vmatpush1.msra.mxu0 0.0
        %968 = vmatprep.subr.mxu0 0.0
        %969 = vmatpush1.msra.mxu0 0.0
        %970 = vmatprep.subr.mxu0 0.0
        %971 = vmatpush1.msra.mxu0 0.0
        %972 = vmatprep.subr.mxu0 0.0
        %973 = vmatpush1.msra.mxu0 0.0
        %974 = vmatprep.subr.mxu0 0.0
        %975 = vmatpush1.msra.mxu0 0.0
        %976 = vmatprep.subr.mxu0 0.0
        %977 = vmatpush1.msra.mxu0 0.0
        %978 = vmatprep.subr.mxu0 0.0
        %979 = vmatpush1.msra.mxu0 0.0
        %980 = vmatprep.subr.mxu0 0.0
        %981 = vmatpush1.msra.mxu0 0.0
        %982 = vmatprep.subr.mxu0 0.0
        %983 = vmatpush1.msra.mxu0 0.0
        %984 = vmatprep.subr.mxu0 0.0
        %985 = vmatpush1.msra.mxu0 0.0
        %986 = vmatprep.subr.mxu0 0.0
        %987 = vmatpush1.msra.mxu0 0.0
        %988 = vmatprep.mubr.f32.mxu0 0.0
        %989 = vmatmul.mubr.f32.gmra.mrb[0].mxu0 %v918
        %v990 = vpop.f32.mrb[0].mxu0
        %v991 = vadd.f32 0.0, %v990
        %v992 = vpop.f32.mrb[0].mxu0
        %993 = vdwg.mxu0
        %vm994 = vcmask 171008
        %v996 = vsel %vm994, %v895, 0
        %vm998 = vcmask 1044480
        %v1000 = vsel %vm998, %v914, 0
        %1002 = vmatprep.subr.mxu0 0.0
        %1003 = vmatpush1.msra.mxu0 %v912
        %1004 = vmatprep.subr.mxu0 0.0
        %1005 = vmatpush1.msra.mxu0 %v913
        %1006 = vmatprep.subr.mxu0 0.0
        %1007 = vmatpush1.msra.mxu0 %v1000
        %1008 = vmatprep.subr.mxu0 0.0
        %1009 = vmatpush1.msra.mxu0 0.0
        %1010 = vmatprep.subr.mxu0 0.0
        %1011 = vmatpush1.msra.mxu0 0.0
        %1012 = vmatprep.subr.mxu0 0.0
        %1013 = vmatpush1.msra.mxu0 0.0
        %1014 = vmatprep.subr.mxu0 0.0
        %1015 = vmatpush1.msra.mxu0 0.0
        %1016 = vmatprep.subr.mxu0 0.0
        %1017 = vmatpush1.msra.mxu0 0.0
        %1018 = vmatprep.subr.mxu0 0.0
        %1019 = vmatpush1.msra.mxu0 0.0
        %1020 = vmatprep.subr.mxu0 0.0
        %1021 = vmatpush1.msra.mxu0 0.0
        %1022 = vmatprep.subr.mxu0 0.0
        %1023 = vmatpush1.msra.mxu0 0.0
        %1024 = vmatprep.subr.mxu0 0.0
        %1025 = vmatpush1.msra.mxu0 0.0
        %1026 = vmatprep.subr.mxu0 0.0
        %1027 = vmatpush1.msra.mxu0 0.0
        %1028 = vmatprep.subr.mxu0 0.0
        %1029 = vmatpush1.msra.mxu0 0.0
        %1030 = vmatprep.subr.mxu0 0.0
        %1031 = vmatpush1.msra.mxu0 0.0
        %1032 = vmatprep.subr.mxu0 0.0
        %1033 = vmatpush1.msra.mxu0 0.0
        %1034 = vmatprep.subr.mxu0 0.0
        %1035 = vmatpush1.msra.mxu0 0.0
        %1036 = vmatprep.subr.mxu0 0.0
        %1037 = vmatpush1.msra.mxu0 0.0
        %1038 = vmatprep.subr.mxu0 0.0
        %1039 = vmatpush1.msra.mxu0 0.0
        %1040 = vmatprep.subr.mxu0 0.0
        %1041 = vmatpush1.msra.mxu0 0.0
        %1042 = vmatprep.subr.mxu0 0.0
        %1043 = vmatpush1.msra.mxu0 0.0
        %1044 = vmatprep.subr.mxu0 0.0
        %1045 = vmatpush1.msra.mxu0 0.0
        %1046 = vmatprep.subr.mxu0 0.0
        %1047 = vmatpush1.msra.mxu0 0.0
        %1048 = vmatprep.subr.mxu0 0.0
        %1049 = vmatpush1.msra.mxu0 0.0
        %1050 = vmatprep.subr.mxu0 0.0
        %1051 = vmatpush1.msra.mxu0 0.0
        %1052 = vmatprep.subr.mxu0 0.0
        %1053 = vmatpush1.msra.mxu0 0.0
        %1054 = vmatprep.subr.mxu0 0.0
        %1055 = vmatpush1.msra.mxu0 0.0
        %1056 = vmatprep.subr.mxu0 0.0
        %1057 = vmatpush1.msra.mxu0 0.0
        %1058 = vmatprep.subr.mxu0 0.0
        %1059 = vmatpush1.msra.mxu0 0.0
        %1060 = vmatprep.subr.mxu0 0.0
        %1061 = vmatpush1.msra.mxu0 0.0
        %1062 = vmatprep.subr.mxu0 0.0
        %1063 = vmatpush1.msra.mxu0 0.0
        %1064 = vmatprep.subr.mxu0 0.0
        %1065 = vmatpush1.msra.mxu0 0.0
        %1066 = vmatprep.mubr.f32.mxu0 0.0
        %1067 = vmatmul.mubr.f32.gmra.mrb[0].mxu0 %v996
        %v1068 = vpop.f32.mrb[0].mxu0
        %v1069 = vadd.f32 %v991, %v1068
        %v1070 = vpop.f32.mrb[0].mxu0
        %1071 = vdwg.mxu0
        %v1072 = vld [vmem:[%s8] sm:$0x1]
        %v1074 = vlaneseq
        %v1075 = vshrl.u32 %v1074, 7
        %v1076 = vsub.s32 0, %v1075
        %v1077 = vrot.slane %v1072, %v1076
        %v1079 = vadd.f32 %v1069, %v1077
        %v1080 = vmax.f32 %v1079, 0.0
        %v1081 = vld [vmem:[#allocation12] sm:$0x1]
        %v1083 = vlaneseq
        %v1084 = vshrl.u32 %v1083, 7
        %v1085 = vsub.s32 0, %v1084
        %v1086 = vrot.slane %v1081, %v1085
        %v1088 = vmul.f32 %v1080, %v1086
        %v1089 = vld [vmem:[#allocation13] sm:$0x1]
        %v1091 = vlaneseq
        %v1092 = vshrl.u32 %v1091, 7
        %v1093 = vsub.s32 0, %v1092
        %v1094 = vrot.slane %v1089, %v1093
        %v1096 = vadd.f32 %v1088, %v1094
        %v1097 = vld [vmem:[%s11] sm:$0xff]
        %v1098 = vld [vmem:[%s11 + $0x8] sm:$0xff]
        %v1099 = vld [vmem:[%s11 + $0x10] sm:$0xff]
        %v1100 = vld [vmem:[%s11 + $0x18] sm:$0xff]
        %v1101 = vld [vmem:[%s12] sm:$0x1]
        %v1103 = vlaneseq
        %v1104 = vshrl.u32 %v1103, 7
        %v1105 = vsub.s32 0, %v1104
        %v1106 = vrot.slane %v1101, %v1105
        %vm1108 = vcmask 261120
        %v1110 = vsel %vm1108, %v1096, 0
        %1112 = vmatprep.subr.mxu0 0.0
        %1113 = vmatpush1.msra.mxu0 %v1097
        %1114 = vmatprep.subr.mxu0 0.0
        %1115 = vmatpush1.msra.mxu0 %v1098
        %1116 = vmatprep.subr.mxu0 0.0
        %1117 = vmatpush1.msra.mxu0 %v1099
        %1118 = vmatprep.subr.mxu0 0.0
        %1119 = vmatpush1.msra.mxu0 %v1100
        %1120 = vmatprep.subr.mxu0 0.0
        %1121 = vmatpush1.msra.mxu0 0.0
        %1122 = vmatprep.subr.mxu0 0.0
        %1123 = vmatpush1.msra.mxu0 0.0
        %1124 = vmatprep.subr.mxu0 0.0
        %1125 = vmatpush1.msra.mxu0 0.0
        %1126 = vmatprep.subr.mxu0 0.0
        %1127 = vmatpush1.msra.mxu0 0.0
        %1128 = vmatprep.subr.mxu0 0.0
        %1129 = vmatpush1.msra.mxu0 0.0
        %1130 = vmatprep.subr.mxu0 0.0
        %1131 = vmatpush1.msra.mxu0 0.0
        %1132 = vmatprep.subr.mxu0 0.0
        %1133 = vmatpush1.msra.mxu0 0.0
        %1134 = vmatprep.subr.mxu0 0.0
        %1135 = vmatpush1.msra.mxu0 0.0
        %1136 = vmatprep.subr.mxu0 0.0
        %1137 = vmatpush1.msra.mxu0 0.0
        %1138 = vmatprep.subr.mxu0 0.0
        %1139 = vmatpush1.msra.mxu0 0.0
        %1140 = vmatprep.subr.mxu0 0.0
        %1141 = vmatpush1.msra.mxu0 0.0
        %1142 = vmatprep.subr.mxu0 0.0
        %1143 = vmatpush1.msra.mxu0 0.0
        %1144 = vmatprep.subr.mxu0 0.0
        %1145 = vmatpush1.msra.mxu0 0.0
        %1146 = vmatprep.subr.mxu0 0.0
        %1147 = vmatpush1.msra.mxu0 0.0
        %1148 = vmatprep.subr.mxu0 0.0
        %1149 = vmatpush1.msra.mxu0 0.0
        %1150 = vmatprep.subr.mxu0 0.0
        %1151 = vmatpush1.msra.mxu0 0.0
        %1152 = vmatprep.subr.mxu0 0.0
        %1153 = vmatpush1.msra.mxu0 0.0
        %1154 = vmatprep.subr.mxu0 0.0
        %1155 = vmatpush1.msra.mxu0 0.0
        %1156 = vmatprep.subr.mxu0 0.0
        %1157 = vmatpush1.msra.mxu0 0.0
        %1158 = vmatprep.subr.mxu0 0.0
        %1159 = vmatpush1.msra.mxu0 0.0
        %1160 = vmatprep.subr.mxu0 0.0
        %1161 = vmatpush1.msra.mxu0 0.0
        %1162 = vmatprep.subr.mxu0 0.0
        %1163 = vmatpush1.msra.mxu0 0.0
        %1164 = vmatprep.subr.mxu0 0.0
        %1165 = vmatpush1.msra.mxu0 0.0
        %1166 = vmatprep.subr.mxu0 0.0
        %1167 = vmatpush1.msra.mxu0 0.0
        %1168 = vmatprep.subr.mxu0 0.0
        %1169 = vmatpush1.msra.mxu0 0.0
        %1170 = vmatprep.subr.mxu0 0.0
        %1171 = vmatpush1.msra.mxu0 0.0
        %1172 = vmatprep.subr.mxu0 0.0
        %1173 = vmatpush1.msra.mxu0 0.0
        %1174 = vmatprep.subr.mxu0 0.0
        %1175 = vmatpush1.msra.mxu0 0.0
        %1176 = vmatprep.mubr.f32.mxu0 0.0
        %1177 = vmatmul.mubr.f32.gmra.mrb[0].mxu0 %v1110
        %v1178 = vpop.f32.mrb[0].mxu0
        %v1179 = vadd.f32 %v1106, %v1178
        %v1180 = vpop.f32.mrb[0].mxu0
        %1181 = vdwg.mxu0
        %v1182 = vmax.f32 %v1179, 0.0
        %v1183 = vld [vmem:[%s13] sm:$0xff]
        %v1184 = vld [vmem:[%s13 + $0x8] sm:$0xff]
        %v1185 = vld [vmem:[%s13 + $0x10] sm:$0xff]
        %v1186 = vld [vmem:[%s13 + $0x18] sm:$0xff]
        %v1187 = vld [vmem:[#allocation14] sm:$0x1]
        %v1189 = vlaneseq
        %v1190 = vshrl.u32 %v1189, 7
        %v1191 = vsub.s32 0, %v1190
        %v1192 = vrot.slane %v1187, %v1191
        %v1195 = vsel %vm1108, %v1182, 0
        %1197 = vmatprep.subr.mxu0 0.0
        %1198 = vmatpush1.msra.mxu0 %v1183
        %1199 = vmatprep.subr.mxu0 0.0
        %1200 = vmatpush1.msra.mxu0 %v1184
        %1201 = vmatprep.subr.mxu0 0.0
        %1202 = vmatpush1.msra.mxu0 %v1185
        %1203 = vmatprep.subr.mxu0 0.0
        %1204 = vmatpush1.msra.mxu0 %v1186
        %1205 = vmatprep.subr.mxu0 0.0
        %1206 = vmatpush1.msra.mxu0 0.0
        %1207 = vmatprep.subr.mxu0 0.0
        %1208 = vmatpush1.msra.mxu0 0.0
        %1209 = vmatprep.subr.mxu0 0.0
        %1210 = vmatpush1.msra.mxu0 0.0
        %1211 = vmatprep.subr.mxu0 0.0
        %1212 = vmatpush1.msra.mxu0 0.0
        %1213 = vmatprep.subr.mxu0 0.0
        %1214 = vmatpush1.msra.mxu0 0.0
        %1215 = vmatprep.subr.mxu0 0.0
        %1216 = vmatpush1.msra.mxu0 0.0
        %1217 = vmatprep.subr.mxu0 0.0
        %1218 = vmatpush1.msra.mxu0 0.0
        %1219 = vmatprep.subr.mxu0 0.0
        %1220 = vmatpush1.msra.mxu0 0.0
        %1221 = vmatprep.subr.mxu0 0.0
        %1222 = vmatpush1.msra.mxu0 0.0
        %1223 = vmatprep.subr.mxu0 0.0
        %1224 = vmatpush1.msra.mxu0 0.0
        %1225 = vmatprep.subr.mxu0 0.0
        %1226 = vmatpush1.msra.mxu0 0.0
        %1227 = vmatprep.subr.mxu0 0.0
        %1228 = vmatpush1.msra.mxu0 0.0
        %1229 = vmatprep.subr.mxu0 0.0
        %1230 = vmatpush1.msra.mxu0 0.0
        %1231 = vmatprep.subr.mxu0 0.0
        %1232 = vmatpush1.msra.mxu0 0.0
        %1233 = vmatprep.subr.mxu0 0.0
        %1234 = vmatpush1.msra.mxu0 0.0
        %1235 = vmatprep.subr.mxu0 0.0
        %1236 = vmatpush1.msra.mxu0 0.0
        %1237 = vmatprep.subr.mxu0 0.0
        %1238 = vmatpush1.msra.mxu0 0.0
        %1239 = vmatprep.subr.mxu0 0.0
        %1240 = vmatpush1.msra.mxu0 0.0
        %1241 = vmatprep.subr.mxu0 0.0
        %1242 = vmatpush1.msra.mxu0 0.0
        %1243 = vmatprep.subr.mxu0 0.0
        %1244 = vmatpush1.msra.mxu0 0.0
        %1245 = vmatprep.subr.mxu0 0.0
        %1246 = vmatpush1.msra.mxu0 0.0
        %1247 = vmatprep.subr.mxu0 0.0
        %1248 = vmatpush1.msra.mxu0 0.0
        %1249 = vmatprep.subr.mxu0 0.0
        %1250 = vmatpush1.msra.mxu0 0.0
        %1251 = vmatprep.subr.mxu0 0.0
        %1252 = vmatpush1.msra.mxu0 0.0
        %1253 = vmatprep.subr.mxu0 0.0
        %1254 = vmatpush1.msra.mxu0 0.0
        %1255 = vmatprep.subr.mxu0 0.0
        %1256 = vmatpush1.msra.mxu0 0.0
        %1257 = vmatprep.subr.mxu0 0.0
        %1258 = vmatpush1.msra.mxu0 0.0
        %1259 = vmatprep.subr.mxu0 0.0
        %1260 = vmatpush1.msra.mxu0 0.0
        %1261 = vmatprep.mubr.f32.mxu0 0.0
        %1262 = vmatmul.mubr.f32.gmra.mrb[0].mxu0 %v1195
        %v1263 = vpop.f32.mrb[0].mxu0
        %v1264 = vadd.f32 %v1192, %v1263
        %v1265 = vpop.f32.mrb[0].mxu0
        %1266 = vdwg.mxu0
        %vm1267 = vcmp.gt.f32.partialorder %v1264, 20.0
        %v1268 = vmin.f32 %v1264, 20.0
        %v1269 = vmul.f32 %v1268, 1.442695
        %v1270 = vpow.pop %v1269
        %v1271 = vadd.f32 %v1270, 1.0
        %v1272 = vlog2.pop %v1271
        %v1273 = vmul.f32 %v1272, 0.6931472
        %v1274 = vmul.f32 -0.5, %v1270
        %v1275 = vadd.f32 %v1274, 1.0
        %v1276 = vmul.f32 %v1275, %v1270
        %v1277 = vand.u32 2147483647, %v1270
        %vm1278 = vcmp.lt.f32.partialorder %v1277, 0.0004427343
        %v1279 = vsel %vm1278, %v1276, %v1273
        %v1280 = vsel %vm1267, %v1264, %v1279
        %vm1281 = vcmask 7168
        %1282 = vst.msk [vmem:[%s520] sm:$0xff] %vm1281, %v1280
      $region104: #{netmodel_forward.1} parent=79 // pred_fallthru
        _
      %p1283 = scmp.lt.s32.totalorder %s33, 0
      %s1284 = scalar_select %p1283, %s33, 0
      %s1285 = smul.addr %s1284, 8
      %s1286 = scalar_lea.vmem %s15, %s1285
      // Predicated region
      $region105: #{netmodel_forward.1} parent=79 // pred_check
        %p1287 = pneg %p383
      $region106: #{netmodel_forward.1} parent=79 // pred_check_branch
        %1289 = sbr.rel (%p1287) target = $region108
      $region107: #{netmodel_forward.1} parent=79 // pred_region
        _
      $region108: #{netmodel_forward.1} parent=79 // pred_fallthru
        _
      // Predicated region
      $region109: #{netmodel_forward.1} parent=79 // pred_check
        %p1290 = pneg %p383
      $region110: #{netmodel_forward.1} parent=79 // pred_check_branch
        %1292 = sbr.rel (%p1290) target = $region112
      $region111: #{netmodel_forward.1} parent=79 // pred_region
        %p1293 = scmp.lt.s32.totalorder %s33, 0
        %s1294 = scalar_select %p1293, %s33, 0
        %s1295 = smul.addr %s1294, 8
        %s1296 = scalar_lea.vmem %s15, %s1295
      $region112: #{netmodel_forward.1} parent=79 // pred_fallthru
        _
    $region80: #{netmodel_forward.1} parent=5 // pred_fallthru
      _
    %p1297 = scmp.le.s32.totalorder 2, %s23
    // Predicated region
    $region113: #{netmodel_forward.1} parent=5 // pred_check
      %p1298 = pneg %p1297
    $region114: #{netmodel_forward.1} parent=5 // pred_check_branch
      %1300 = sbr.rel (%p1298) target = $region116
    $region115: #{netmodel_forward.1} parent=5 // pred_region
      %s1301 = ssub.s32 %s23, 2
    $region116: #{netmodel_forward.1} parent=5 // pred_fallthru
      _
  $region6: #{netmodel_forward.1} parent=0 // loop_footer
    %s27 = sadd.s32 1, %s23
  $region7: #{netmodel_forward.1} parent=0 // loop_footer_branch
    %22 = sbr.rel target = $region3
  $region8: #{netmodel_forward.1} parent=0 // loop_exit
    _

</llo_original>
